<compile_context>
chip_gen: v6e
topology: v6e:2x2x1
jax: 0.10.0
libtpu: 0.0.40
codegen_flags: <defaults>
</compile_context>

<pallas_src>
import jax
import jax.numpy as jnp
from jax.experimental import pallas as pl
from jax.experimental.pallas import tpu as pltpu


def _round_up(x, m):
    return ((x + m - 1) // m) * m


def _pack_bf16_pair(lo_f32, hi_f32):
    """uint32[n, d] whose bits are (bf16(hi) << 16) | bf16(lo)."""
    lo = jax.lax.bitcast_convert_type(lo_f32.astype(jnp.bfloat16), jnp.uint16).astype(jnp.uint32)
    hi = jax.lax.bitcast_convert_type(hi_f32.astype(jnp.bfloat16), jnp.uint16).astype(jnp.uint32)
    return (hi << 16) | lo


def _dme_kernel(s_idx_ref, o_idx_ref,          # scalar-prefetched indices (SMEM)
                r_ids_ref, ent_hbm, rel_ref,   # inputs: rel ids (VMEM), packed ent table (HBM), resident rel table (VMEM)
                out_ref,                       # (block_b, 1) f32 scores
                s_buf, o_buf, sem):            # scratch: u32 gather buffers + DMA sems
    block_b, d = s_buf.shape
    base = pl.program_id(0) * block_b

    # 1) Fused gather: DMA each subject/object packed row straight from the HBM
    #    entity table into VMEM scratch (no per-row grid steps, no XLA gather).
    @pl.loop(0, block_b)
    def _(j):
        s_row = s_idx_ref[base + j]
        o_row = o_idx_ref[base + j]
        pltpu.make_async_copy(ent_hbm.at[pl.ds(s_row, 1)],
                              s_buf.at[pl.ds(j, 1)], sem.at[0]).start()
        pltpu.make_async_copy(ent_hbm.at[pl.ds(o_row, 1)],
                              o_buf.at[pl.ds(j, 1)], sem.at[1]).start()

    # 2) Relation lookup from the VMEM-resident table while the entity DMAs fly:
    #    exact one-hot selection on the otherwise idle MXU (0/1 * bf16 -> f32 acc
    #    reproduces the stored bf16 row bit-exactly).
    nr = rel_ref.shape[0]
    r_ids = r_ids_ref[...]                                            # (block_b, 1) int32
    onehot = (jax.lax.broadcasted_iota(jnp.int32, (block_b, nr), 1) == r_ids)
    rel_rows = jnp.dot(onehot.astype(rel_ref.dtype), rel_ref[...],
                       preferred_element_type=jnp.float32)            # (block_b, 3d) f32
    r_h = rel_rows[:, :d]
    r_t = rel_rows[:, d:2 * d]
    r_dm = rel_rows[:, 2 * d:]

    # 3) One wait per stream sized for the whole tile (the per-row copies tile
    #    the destination buffers exactly; the src arg of the wait is unused).
    pltpu.make_async_copy(s_buf, s_buf, sem.at[0]).wait()
    pltpu.make_async_copy(o_buf, o_buf, sem.at[1]).wait()

    # 4) Unpack uint32 -> (E, E_DM) bf16 pair and upcast to f32 (VPU bit tricks).
    w_s = s_buf[...]
    w_o = o_buf[...]
    s_e = pltpu.bitcast(w_s << 16, jnp.float32)             # low 16 bits  = E row
    s_dm = pltpu.bitcast((w_s >> 16) << 16, jnp.float32)    # high 16 bits = E_DM row
    o_e = pltpu.bitcast(w_o << 16, jnp.float32)
    o_dm = pltpu.bitcast((w_o >> 16) << 16, jnp.float32)

    # 5) Fused DistMult + E score: one cross-lane reduce per tile.
    fused = s_e * r_h + o_e * r_t + s_dm * r_dm * o_dm
    out_ref[...] = jnp.sum(fused, axis=-1, keepdims=True)


def dme_score(ent_packed, rel_cat, s_idx, r_idx, o_idx, *, block_b=None):
    """Score a batch of (s, r, o) triples.

    ent_packed: (Ne, Dp)   uint32, bf16(E) | bf16(E_DM) packed per element.
    rel_cat:    (Nrp, 3Dp) bf16,   [R_head | R_tail | R_DM], resident in VMEM.
    s/r/o:      (B,) integer index arrays.
    Returns (B,) float32 scores.
    """
    _, dp = ent_packed.shape
    nr_pad, three_d = rel_cat.shape
    assert dp % 128 == 0 and three_d == 3 * dp and nr_pad % 8 == 0

    (b,) = s_idx.shape
    assert r_idx.shape == (b,) and o_idx.shape == (b,)
    s_idx = s_idx.astype(jnp.int32)
    r_idx = r_idx.astype(jnp.int32)
    o_idx = o_idx.astype(jnp.int32)

    # --- batch tile sizing ----------------------------------------------------
    # VMEM per tile ~ 2*bb*dp*4 (u32 gather scratch) + ~10*bb*dp*4 of f32
    # unpack / rel-row temporaries; keep that under ~24 MiB so tiles + resident
    # relation table stay well inside v7x's 64 MiB physical VMEM.
    cap = max(8, ((24 << 20) // (48 * dp)) // 8 * 8)
    if block_b is None:
        block_b = 512
        if b >= 256:
            # v7x megacore: keep >= 2 tiles so the "parallel" batch axis spans
            # both TensorCores (v5e/v6e have one TC, harmless there).
            block_b = min(block_b, _round_up(pl.cdiv(b, 2), 128))
    block_b = max(8, _round_up(block_b, 8))
    block_b = min(block_b, cap, _round_up(b, 8))

    # Pad only the tiny int32 index arrays (row 0 is always a valid table row);
    # padded output rows are sliced off below.
    bp = _round_up(b, block_b)
    if bp != b:
        s_idx = jnp.pad(s_idx, (0, bp - b))
        r_idx = jnp.pad(r_idx, (0, bp - b))
        o_idx = jnp.pad(o_idx, (0, bp - b))
    r_ids2d = r_idx.reshape(bp, 1)

    vmem_limit = int(min(max(12 * block_b * dp * 4
                             + 2 * nr_pad * three_d * 2
                             + (2 << 20),
                             16 << 20),
                         40 << 20))

    out = pl.pallas_call(
        _dme_kernel,
        out_shape=jax.ShapeDtypeStruct((bp, 1), jnp.float32),
        grid_spec=pltpu.PrefetchScalarGridSpec(
            num_scalar_prefetch=2,                                      # s_idx, o_idx -> SMEM
            grid=(bp // block_b,),
            in_specs=[
                pl.BlockSpec((block_b, 1), lambda i, *_: (i, 0)),       # relation ids (VMEM tile)
                pl.BlockSpec(memory_space=pl.ANY),                      # packed entity table (HBM)
                pl.BlockSpec((nr_pad, three_d), lambda i, *_: (0, 0)),  # resident relation table
            ],
            out_specs=pl.BlockSpec((block_b, 1), lambda i, *_: (i, 0)),
            scratch_shapes=[
                pltpu.VMEM((block_b, dp), jnp.uint32),                  # gathered subject rows
                pltpu.VMEM((block_b, dp), jnp.uint32),                  # gathered object rows
                pltpu.SemaphoreType.DMA((2,)),
            ],
        ),
        compiler_params=pltpu.CompilerParams(
            dimension_semantics=("parallel",),
            vmem_limit_bytes=vmem_limit,
        ),
    )(s_idx, o_idx, r_ids2d, ent_packed, rel_cat)
    return out[:b, 0]


class DMEPallas:
    """JAX/Pallas re-implementation of the DME forward pass (DistMult + E)."""

    def __init__(self, entity_count, relation_count, embedding_dim, key,
                 unit_reg=False, clamp_v=None):
        self.entity_count = entity_count
        self.relation_count = relation_count
        self.embedding_dim = embedding_dim
        self.unit_reg = unit_reg
        self.clamp_v = clamp_v   # None in this config -> clamp branch is a no-op

        keys = jax.random.split(key, 5)
        std = 0.05

        def init(k, n):
            return std * jax.random.normal(k, (n, embedding_dim), jnp.float32)

        # float32 master parameters (mirror the PyTorch module's Embeddings).
        self.E_DM = init(keys[0], entity_count)
        self.R_DM = init(keys[1], relation_count)
        self.E = init(keys[2], entity_count)
        self.R_head = init(keys[3], relation_count)
        self.R_tail = init(keys[4], relation_count)

        # Kernel-friendly derived tables: lane-align the embedding axis (zero
        # columns contribute 0 to every score) and pad relation rows for the MXU.
        dp = _round_up(embedding_dim, 128)
        nrp = _round_up(relation_count, 128)

        def pad_cols(t):
            return jnp.pad(t, ((0, 0), (0, dp - embedding_dim)))

        def pad_rel(t):
            return jnp.pad(pad_cols(t), ((0, nrp - relation_count), (0, 0)))

        # Entity table: one uint32 per dimension packing (bf16 E, bf16 E_DM) so a
        # single gathered row carries both embeddings at bf16 storage cost.
        self._ent_packed = _pack_bf16_pair(pad_cols(self.E), pad_cols(self.E_DM))   # (Ne, dp) u32
        # Relation table: [R_head | R_tail | R_DM], bf16, kept resident in VMEM.
        # TODO(synk): for very large relation vocabularies (Nrp*3Dp bf16 >> a few
        # MiB) replace the resident table + one-hot lookup with the same per-row
        # DMA gather used for the entities.
        self._rel_cat = jnp.concatenate(
            [pad_rel(self.R_head), pad_rel(self.R_tail), pad_rel(self.R_DM)],
            axis=-1).astype(jnp.bfloat16)                                           # (nrp, 3*dp)

    def forward(self, s, r, o, *, block_b=None):
        # TODO(synk): s=None / o=None "score against all entities" broadcast mode
        # (weight.unsqueeze(0) in the reference) is not implemented; indexed only.
        if s is None or o is None:
            raise NotImplementedError("broadcast (score-all-entities) mode not implemented")
        return dme_score(self._ent_packed, self._rel_cat, s, r, o, block_b=block_b)


if __name__ == "__main__":
    entity_count = 50
    relation_count = 7     # not a multiple of 8/128 -> exercises relation-row padding
    embedding_dim = 96     # not a multiple of 128   -> exercises lane padding
    batch = 300            # not a multiple of the tile -> exercises index padding

    key = jax.random.PRNGKey(0)
    k_model, k_s, k_r, k_o = jax.random.split(key, 4)

    model = DMEPallas(entity_count, relation_count, embedding_dim, k_model)

    s = jax.random.randint(k_s, (batch,), 0, entity_count, dtype=jnp.int32)
    r = jax.random.randint(k_r, (batch,), 0, relation_count, dtype=jnp.int32)
    o = jax.random.randint(k_o, (batch,), 0, entity_count, dtype=jnp.int32)

    # Pure-JAX reference of the same math on the bf16-quantized stored tables.
    q = lambda t: t.astype(jnp.bfloat16).astype(jnp.float32)
    E_q, E_DM_q = q(model.E), q(model.E_DM)
    Rh_q, Rt_q, Rdm_q = q(model.R_head), q(model.R_tail), q(model.R_DM)
    ref = (jnp.sum(E_q[s] * Rh_q[r] + E_q[o] * Rt_q[r], axis=-1)
           + jnp.sum(E_DM_q[s] * Rdm_q[r] * E_DM_q[o], axis=-1))

    # Auto-sized tiles (two tiles for B=300 -> exercises the multi-tile grid).
    out = jax.block_until_ready(model.forward(s, r, o))
    assert out.shape == (batch,)
    assert jnp.allclose(out, ref, atol=1e-4, rtol=1e-4), float(jnp.max(jnp.abs(out - ref)))

    # Explicit smaller tile to exercise a different grid shape.
    out_tiled = jax.block_until_ready(model.forward(s, r, o, block_b=128))
    assert jnp.allclose(out_tiled, ref, atol=1e-4, rtol=1e-4)

    print("KERNEL_OK")
</pallas_src>

<mosaic_0001>
module attributes {stable_mosaic.version = 11 : i64} {
  func.func @_dme_kernel(%arg0: i32, %arg1: memref<512xi32, #tpu.memory_space<smem>>, %arg2: memref<512xi32, #tpu.memory_space<smem>>, %arg3: memref<256x1xi32, #tpu.memory_space<vmem>>, %arg4: memref<50x128xi32, #tpu.memory_space<any>>, %arg5: memref<128x384xbf16, #tpu.memory_space<vmem>>, %arg6: memref<256x1xf32, #tpu.memory_space<vmem>>, %arg7: memref<256x128xi32, #tpu.memory_space<vmem>>, %arg8: memref<256x128xi32, #tpu.memory_space<vmem>>, %arg9: memref<2x!tpu.dma_semaphore, #tpu.memory_space<semaphore_mem>>) attributes {dimension_semantics = [#tpu.dimension_semantics<parallel>], iteration_bounds = array<i64: 2>, scalar_prefetch = 2 : i64, scratch_operands = 3 : i64, tpu.core_type = #tpu.core_type<tc>, window_params = [{transform_indices = @transform_0, window_bounds = array<i64: 256, 1>}, {}, {pipeline_mode = #tpu.pipeline_mode<synchronous>, transform_indices = @transform_2, window_bounds = array<i64: 128, 384>}, {transform_indices = @transform_3, window_bounds = array<i64: 256, 1>}]} {
    %c256_i32 = arith.constant 256 : i32
    %0 = arith.muli %arg0, %c256_i32 : i32
    %c0_i32 = arith.constant 0 : i32
    %c256_i32_0 = arith.constant 256 : i32
    %1 = arith.addi %c0_i32, %c256_i32_0 : i32
    %c1_i32 = arith.constant 1 : i32
    scf.for %arg10 = %c0_i32 to %1 step %c1_i32  : i32 {
      %c1_i32_19 = arith.constant 1 : i32
      %45 = arith.muli %arg10, %c1_i32_19 : i32
      %c0_i32_20 = arith.constant 0 : i32
      %46 = arith.addi %c0_i32_20, %45 : i32
      %47 = arith.addi %0, %46 : i32
      %48 = arith.index_cast %47 : i32 to index
      %49 = memref.load %arg1[%48] : memref<512xi32, #tpu.memory_space<smem>>
      %50 = arith.addi %0, %46 : i32
      %51 = arith.index_cast %50 : i32 to index
      %52 = memref.load %arg2[%51] : memref<512xi32, #tpu.memory_space<smem>>
      %c0_i32_21 = arith.constant 0 : i32
      %c0_i32_22 = arith.constant 0 : i32
      %53 = tpu.memref_slice %arg4[%49, %c0_i32_22] : memref<50x128xi32, #tpu.memory_space<any>> -> memref<1x128xi32, #tpu.memory_space<any>>
      %c0_i32_23 = arith.constant 0 : i32
      %54 = tpu.memref_slice %arg7[%46, %c0_i32_23] : memref<256x128xi32, #tpu.memory_space<vmem>> -> memref<1x128xi32, #tpu.memory_space<vmem>>
      %55 = tpu.memref_slice %arg9[%c0_i32_21] : memref<2x!tpu.dma_semaphore, #tpu.memory_space<semaphore_mem>> -> memref<1x!tpu.dma_semaphore, #tpu.memory_space<semaphore_mem>>
      %56 = tpu.memref_squeeze %55 : memref<1x!tpu.dma_semaphore, #tpu.memory_space<semaphore_mem>> -> memref<!tpu.dma_semaphore, #tpu.memory_space<semaphore_mem>>
      tpu.enqueue_dma source(%53 : memref<1x128xi32, #tpu.memory_space<any>>) target(%54 : memref<1x128xi32, #tpu.memory_space<vmem>>) target_semaphore(%56 : memref<!tpu.dma_semaphore, #tpu.memory_space<semaphore_mem>>)
      %c1_i32_24 = arith.constant 1 : i32
      %c0_i32_25 = arith.constant 0 : i32
      %57 = tpu.memref_slice %arg4[%52, %c0_i32_25] : memref<50x128xi32, #tpu.memory_space<any>> -> memref<1x128xi32, #tpu.memory_space<any>>
      %c0_i32_26 = arith.constant 0 : i32
      %58 = tpu.memref_slice %arg8[%46, %c0_i32_26] : memref<256x128xi32, #tpu.memory_space<vmem>> -> memref<1x128xi32, #tpu.memory_space<vmem>>
      %59 = tpu.memref_slice %arg9[%c1_i32_24] : memref<2x!tpu.dma_semaphore, #tpu.memory_space<semaphore_mem>> -> memref<1x!tpu.dma_semaphore, #tpu.memory_space<semaphore_mem>>
      %60 = tpu.memref_squeeze %59 : memref<1x!tpu.dma_semaphore, #tpu.memory_space<semaphore_mem>> -> memref<!tpu.dma_semaphore, #tpu.memory_space<semaphore_mem>>
      tpu.enqueue_dma source(%57 : memref<1x128xi32, #tpu.memory_space<any>>) target(%58 : memref<1x128xi32, #tpu.memory_space<vmem>>) target_semaphore(%60 : memref<!tpu.dma_semaphore, #tpu.memory_space<semaphore_mem>>)
    }
    %c256_i32_1 = arith.constant 256 : i32
    %c0 = arith.constant 0 : index
    %c0_2 = arith.constant 0 : index
    %2 = vector.load %arg3[%c0, %c0_2] : memref<256x1xi32, #tpu.memory_space<vmem>>, vector<256x1xi32>
    %3 = tpu.iota {dimensions = array<i32: 1>} : vector<256x128xi32>
    %4 = vector.broadcast %2 : vector<256x1xi32> to vector<256x128xi32>
    %5 = arith.cmpi eq, %3, %4 : vector<256x128xi32>
    %6 = arith.extui %5 : vector<256x128xi1> to vector<256x128xi32>
    %7 = arith.sitofp %6 : vector<256x128xi32> to vector<256x128xf32>
    %8 = arith.truncf %7 : vector<256x128xf32> to vector<256x128xbf16>
    %c0_3 = arith.constant 0 : index
    %c0_4 = arith.constant 0 : index
    %9 = vector.load %arg5[%c0_3, %c0_4] : memref<128x384xbf16, #tpu.memory_space<vmem>>, vector<128x384xbf16>
    %cst = arith.constant dense<0.000000e+00> : vector<256x384xf32>
    %10 = tpu.matmul %8, %9, %cst {dimension_numbers = #tpu.dot_dimension_numbers<[1], [0], [0], [1], [0, 0, 1, 1], [], []>} : vector<256x128xbf16>, vector<128x384xbf16>, vector<256x384xf32> -> vector<256x384xf32>
    %11 = vector.extract_strided_slice %10 {offsets = [0, 0], sizes = [256, 128], strides = [1, 1]} : vector<256x384xf32> to vector<256x128xf32>
    %12 = vector.extract_strided_slice %10 {offsets = [0, 128], sizes = [256, 128], strides = [1, 1]} : vector<256x384xf32> to vector<256x128xf32>
    %13 = vector.extract_strided_slice %10 {offsets = [0, 256], sizes = [256, 128], strides = [1, 1]} : vector<256x384xf32> to vector<256x128xf32>
    %c0_i32_5 = arith.constant 0 : i32
    %14 = tpu.memref_slice %arg9[%c0_i32_5] : memref<2x!tpu.dma_semaphore, #tpu.memory_space<semaphore_mem>> -> memref<1x!tpu.dma_semaphore, #tpu.memory_space<semaphore_mem>>
    %15 = tpu.memref_squeeze %14 : memref<1x!tpu.dma_semaphore, #tpu.memory_space<semaphore_mem>> -> memref<!tpu.dma_semaphore, #tpu.memory_space<semaphore_mem>>
    tpu.wait_dma2 semaphore(%15 : memref<!tpu.dma_semaphore, #tpu.memory_space<semaphore_mem>>) src(%arg7 : memref<256x128xi32, #tpu.memory_space<vmem>>) dst(%arg7 : memref<256x128xi32, #tpu.memory_space<vmem>>)
    %c1_i32_6 = arith.constant 1 : i32
    %16 = tpu.memref_slice %arg9[%c1_i32_6] : memref<2x!tpu.dma_semaphore, #tpu.memory_space<semaphore_mem>> -> memref<1x!tpu.dma_semaphore, #tpu.memory_space<semaphore_mem>>
    %17 = tpu.memref_squeeze %16 : memref<1x!tpu.dma_semaphore, #tpu.memory_space<semaphore_mem>> -> memref<!tpu.dma_semaphore, #tpu.memory_space<semaphore_mem>>
    tpu.wait_dma2 semaphore(%17 : memref<!tpu.dma_semaphore, #tpu.memory_space<semaphore_mem>>) src(%arg8 : memref<256x128xi32, #tpu.memory_space<vmem>>) dst(%arg8 : memref<256x128xi32, #tpu.memory_space<vmem>>)
    %c0_7 = arith.constant 0 : index
    %c0_8 = arith.constant 0 : index
    %18 = vector.load %arg7[%c0_7, %c0_8] : memref<256x128xi32, #tpu.memory_space<vmem>>, vector<256x128xi32>
    %c0_9 = arith.constant 0 : index
    %c0_10 = arith.constant 0 : index
    %19 = vector.load %arg8[%c0_9, %c0_10] : memref<256x128xi32, #tpu.memory_space<vmem>>, vector<256x128xi32>
    %c16_i32 = arith.constant 16 : i32
    %20 = vector.broadcast %c16_i32 : i32 to vector<256x128xi32>
    %21 = arith.shli %18, %20 : vector<256x128xi32>
    %22 = tpu.bitcast %21 : vector<256x128xi32> -> vector<256x128xf32>
    %c16_i32_11 = arith.constant 16 : i32
    %23 = vector.broadcast %c16_i32_11 : i32 to vector<256x128xi32>
    %24 = arith.shrui %18, %23 : vector<256x128xi32>
    %c16_i32_12 = arith.constant 16 : i32
    %25 = vector.broadcast %c16_i32_12 : i32 to vector<256x128xi32>
    %26 = arith.shli %24, %25 : vector<256x128xi32>
    %27 = tpu.bitcast %26 : vector<256x128xi32> -> vector<256x128xf32>
    %c16_i32_13 = arith.constant 16 : i32
    %28 = vector.broadcast %c16_i32_13 : i32 to vector<256x128xi32>
    %29 = arith.shli %19, %28 : vector<256x128xi32>
    %30 = tpu.bitcast %29 : vector<256x128xi32> -> vector<256x128xf32>
    %c16_i32_14 = arith.constant 16 : i32
    %31 = vector.broadcast %c16_i32_14 : i32 to vector<256x128xi32>
    %32 = arith.shrui %19, %31 : vector<256x128xi32>
    %c16_i32_15 = arith.constant 16 : i32
    %33 = vector.broadcast %c16_i32_15 : i32 to vector<256x128xi32>
    %34 = arith.shli %32, %33 : vector<256x128xi32>
    %35 = tpu.bitcast %34 : vector<256x128xi32> -> vector<256x128xf32>
    %36 = arith.mulf %22, %11 : vector<256x128xf32>
    %37 = arith.mulf %30, %12 : vector<256x128xf32>
    %38 = arith.addf %36, %37 : vector<256x128xf32>
    %39 = arith.mulf %27, %13 : vector<256x128xf32>
    %40 = arith.mulf %39, %35 : vector<256x128xf32>
    %41 = arith.addf %38, %40 : vector<256x128xf32>
    %cst_16 = arith.constant dense<0.000000e+00> : vector<256xf32>
    %42 = vector.multi_reduction <add>, %41, %cst_16 [1] : vector<256x128xf32> to vector<256xf32>
    %43 = vector.shape_cast %42 : vector<256xf32> to vector<256x1xf32>
    %c0_17 = arith.constant 0 : index
    %c0_18 = arith.constant 0 : index
    %44 = vector.load %arg6[%c0_17, %c0_18] : memref<256x1xf32, #tpu.memory_space<vmem>>, vector<256x1xf32>
    tpu.vector_store %arg6[%c0_17, %c0_18], %43 {strides = array<i32>} : memref<256x1xf32, #tpu.memory_space<vmem>>, vector<256x1xf32>,
    return
  }
  func.func @transform_0(%arg0: i32, %arg1: memref<512xi32, #tpu.memory_space<smem>>, %arg2: memref<512xi32, #tpu.memory_space<smem>>) -> (i32, i32) {
    %c0_i32 = arith.constant 0 : i32
    %c0_i32_0 = arith.constant 0 : i32
    return %arg0, %c0_i32 : i32, i32
  }
  func.func @transform_2(%arg0: i32, %arg1: memref<512xi32, #tpu.memory_space<smem>>, %arg2: memref<512xi32, #tpu.memory_space<smem>>) -> (i32, i32) {
    %c0_i32 = arith.constant 0 : i32
    %c0_i32_0 = arith.constant 0 : i32
    %c0_i32_1 = arith.constant 0 : i32
    return %c0_i32, %c0_i32_0 : i32, i32
  }
  func.func @transform_3(%arg0: i32, %arg1: memref<512xi32, #tpu.memory_space<smem>>, %arg2: memref<512xi32, #tpu.memory_space<smem>>) -> (i32, i32) {
    %c0_i32 = arith.constant 0 : i32
    %c0_i32_0 = arith.constant 0 : i32
    return %arg0, %c0_i32 : i32, i32
  }
}

</mosaic_0001>

<llo_original>
// kernel: tpu_custom_call.1
$region0: #{tpu_custom_call.1}
  #allocation0 [shape = 'u32[]', space=smem, size = 0x4, offset = 0x4, fixed_abs, tag = 'smem constant byte address 0x4 - core index']
  #allocation1 [shape = 'u32[144,128]{1,0:T(1,128)}', space=vmem, size = 0x12000, scoped, tag = 'internal scratch']
  #allocation2 [shape = 's32[256,128]{1,0:T(8,128)}', space=vmem, size = 0x20000, scoped, tag = 'scratch operand']
  #allocation3 [shape = 's32[256,128]{1,0:T(8,128)}', space=vmem, size = 0x20000, scoped, tag = 'scratch operand']
  #allocation4 [shape = 's32[2]{0}', space=sflag, size = 0x8, scoped, tag = 'scratch operand']
  #allocation5 [shape = 's32[1]{0}', space=sflag, size = 0x4, scoped, tag = 'scoped memory for tpu_custom_call.1']
  #allocation6 [shape = 'u8[2048]{0}', space=smem, size = 0x800, scoped, tag = 'prefetched SMEM operand 0']
  #allocation7 [shape = 'u8[2048]{0}', space=smem, size = 0x800, scoped, tag = 'prefetched SMEM operand 1']
  #allocation8 [shape = 's32[]', space=sflag, size = 0x4, offset = 0, fixed_abs, tag = 'sflag constant byte address 0x0 - dummy sync flag']
  #allocation9 [shape = 's32[]', space=sflag, size = 0x4, offset = 0, fixed_abs, tag = 'sflag constant byte address 0x0 - dummy sync flag']
  %s0 = inlined_call_operand.vmem [shape: s32[512], index: 0, kind: input, shape index: {}]
  %s1 = inlined_call_operand.vmem [shape: s32[512], index: 1, kind: input, shape index: {}]
  %s2 = inlined_call_operand.vmem [shape: s32[512,1], index: 2, kind: input, shape index: {}]
  %s3 = inlined_call_operand.vmem [shape: u32[50,128], index: 3, kind: input, shape index: {}]
  %s4 = inlined_call_operand.vmem [shape: bf16[128,384], index: 4, kind: input, shape index: {}]
  %s5 = inlined_call_operand.vmem [shape: f32[512,1], index: 5, kind: output, shape index: {}]
  %s6 = sld [smem:[#allocation0]]
  $region108: #{tpu_custom_call.1} parent=0
    _
  %s8 = ssub.s32 1, %s6
  %s9 = scalar_select 0, %s8, %s6
  %s10 = sshll.u32 %s0, 4
  %s11 = int_to_ptr.vmem [resolvable:$true] %s10
  %13 = dma.vmem_to_smem %s11, 64, [#allocation6], [#allocation5]
  %s14 = sshll.u32 %s1, 4
  %s15 = int_to_ptr.vmem [resolvable:$true] %s14
  %17 = dma.vmem_to_smem %s15, 64, [#allocation7], [#allocation5]
  %18 = dma.done [#allocation5], 128
  %19 = sfence
  loop: start=0, step=1, limit=4
  $region2: #{tpu_custom_call.1} parent=0 // loop_pre_header
    _
  $region3: #{tpu_custom_call.1} parent=0 // loop_header
    %s21 = sphi 0, %s25
    %p22 = scmp.ge.s32.totalorder %s21, 4
    %s31 = sphi 0, %s33
    %s34 = sphi 0, %s31
    %s35 = sphi 0, %s34
    %s51 = sphi 0, %s35
    %s55 = sphi 0, %s55
    %s57 = sphi 0, %s55
    %s58 = sphi 0, %s57
    %s72 = sphi 0, %s58
    %s78 = sphi 0, %s80
    %s81 = sphi 0, %s78
    %s82 = sphi 0, %s81
    %s98 = sphi 0, %s82
  $region4: #{tpu_custom_call.1} parent=0 // loop_header_branch
    %24 = sbr.rel (%p22) target = $region8
  $region5: #{tpu_custom_call.1} parent=0 // loop_body
    %s26 = ssub.s32 %s21, 1
    %s27 = ssub.s32 %s21, 2
    %s28 = sadd.s32 %s21, 1
    %s29 = ssub.s32 %s21, %s28
    %p30 = scmp.eq.s32.totalorder %s29, 0
    %s32 = sadd.s32 %s31, 1
    %s33 = scalar_select %p30, %s31, %s32
    %p36 = pneg %p30
    %p37 = scmp.eq.s32.totalorder %s21, 1
    %p38 = por %p36, %p37
    %p39 = scmp.ne.s32.totalorder %s31, %s34
    %p40 = scmp.eq.s32.totalorder %s21, 0
    %p41 = por %p39, %p40
    %p42 = scmp.ne.s32.totalorder %s31, %s34
    %p43 = scmp.eq.s32.totalorder %s26, 1
    %p44 = por %p42, %p43
    %p45 = scmp.ne.s32.totalorder %s34, %s35
    %p46 = scmp.eq.s32.totalorder %s26, 0
    %p47 = por %p45, %p46
    %p48 = scmp.ne.s32.totalorder %s34, %s35
    %p49 = scmp.eq.s32.totalorder %s27, 1
    %p50 = por %p48, %p49
    %p52 = scmp.ne.s32.totalorder %s35, %s51
    %p53 = scmp.eq.s32.totalorder %s27, 0
    %p54 = por %p52, %p53
    %s56 = sadd.s32 %s55, 1
    %p59 = scmp.eq.s32.totalorder %s21, 1
    %p60 = scmp.ne.s32.totalorder %s55, %s57
    %p61 = scmp.eq.s32.totalorder %s21, 0
    %p62 = por %p60, %p61
    %p63 = scmp.ne.s32.totalorder %s55, %s57
    %p64 = scmp.eq.s32.totalorder %s26, 1
    %p65 = por %p63, %p64
    %p66 = scmp.ne.s32.totalorder %s57, %s58
    %p67 = scmp.eq.s32.totalorder %s26, 0
    %p68 = por %p66, %p67
    %p69 = scmp.ne.s32.totalorder %s57, %s58
    %p70 = scmp.eq.s32.totalorder %s27, 1
    %p71 = por %p69, %p70
    %p73 = scmp.ne.s32.totalorder %s58, %s72
    %p74 = scmp.eq.s32.totalorder %s27, 0
    %p75 = por %p73, %p74
    %s76 = ssub.s32 %s21, %s28
    %p77 = scmp.eq.s32.totalorder %s76, 0
    %s79 = sadd.s32 %s78, 1
    %s80 = scalar_select %p77, %s78, %s79
    %p83 = pneg %p77
    %p84 = scmp.eq.s32.totalorder %s21, 1
    %p85 = por %p83, %p84
    %p86 = scmp.ne.s32.totalorder %s78, %s81
    %p87 = scmp.eq.s32.totalorder %s21, 0
    %p88 = por %p86, %p87
    %p89 = scmp.ne.s32.totalorder %s78, %s81
    %p90 = scmp.eq.s32.totalorder %s26, 1
    %p91 = por %p89, %p90
    %p92 = scmp.ne.s32.totalorder %s81, %s82
    %p93 = scmp.eq.s32.totalorder %s26, 0
    %p94 = por %p92, %p93
    %p95 = scmp.ne.s32.totalorder %s81, %s82
    %p96 = scmp.eq.s32.totalorder %s27, 1
    %p97 = por %p95, %p96
    %p99 = scmp.ne.s32.totalorder %s82, %s98
    %p100 = scmp.eq.s32.totalorder %s27, 0
    %p101 = por %p99, %p100
    %p102 = scmp.le.s32.totalorder 1, %s21
    %p103 = scmp.lt.s32.totalorder %s21, 3
    %p104 = pnand %p102, %p103
    %p105 = pneg %p104
    // Predicated region
    $region9: #{tpu_custom_call.1} parent=5 // pred_check
      _
    $region10: #{tpu_custom_call.1} parent=5 // pred_check_branch
      %107 = sbr.rel (%p104) target = $region12
    $region11: #{tpu_custom_call.1} parent=5 // pred_region
      %s108 = ssub.s32 %s21, 1
      // Predicated region
      $region13: #{tpu_custom_call.1} parent=11 // pred_check
        %p109 = pneg %p68
      $region14: #{tpu_custom_call.1} parent=11 // pred_check_branch
        %111 = sbr.rel (%p109) target = $region16
      $region15: #{tpu_custom_call.1} parent=11 // pred_region
        _
      $region16: #{tpu_custom_call.1} parent=11 // pred_fallthru
        _
    $region12: #{tpu_custom_call.1} parent=5 // pred_fallthru
      _
    %p112 = scmp.lt.s32.totalorder %s21, 2
    // Predicated region
    $region17: #{tpu_custom_call.1} parent=5 // pred_check
      %p113 = pneg %p112
    $region18: #{tpu_custom_call.1} parent=5 // pred_check_branch
      %115 = sbr.rel (%p113) target = $region20
    $region19: #{tpu_custom_call.1} parent=5 // pred_region
      // Predicated region
      $region21: #{tpu_custom_call.1} parent=19 // pred_check
        %p116 = pneg %p41
      $region22: #{tpu_custom_call.1} parent=19 // pred_check_branch
        %118 = sbr.rel (%p116) target = $region24
      $region23: #{tpu_custom_call.1} parent=19 // pred_region
        %s119 = smul.u32 32, %s21
        %p120 = scmp.lt.s32.totalorder %s119, 63
        %s121 = scalar_select %p120, %s119, 63
        %s122 = smul.addr %s121, 8
        %s123 = scalar_lea.vmem %s2, %s122
        %s124 = smul.u32 32, %s21
      $region24: #{tpu_custom_call.1} parent=19 // pred_fallthru
        _
    $region20: #{tpu_custom_call.1} parent=5 // pred_fallthru
      _
    %p125 = scmp.le.s32.totalorder 1, %s21
    %p126 = scmp.lt.s32.totalorder %s21, 3
    %p127 = pnand %p125, %p126
    %p128 = pneg %p127
    // Predicated region
    $region25: #{tpu_custom_call.1} parent=5 // pred_check
      _
    $region26: #{tpu_custom_call.1} parent=5 // pred_check_branch
      %130 = sbr.rel (%p127) target = $region28
    $region27: #{tpu_custom_call.1} parent=5 // pred_region
      %s131 = ssub.s32 %s21, 1
      %s132 = smul.u32 32, %s26
      %p133 = scmp.lt.s32.totalorder %s132, 63
      %s134 = scalar_select %p133, %s132, 63
      %s135 = smul.addr %s134, 8
      %s136 = scalar_lea.vmem %s2, %s135
      %p137 = pneg %p47
      %p138 = pneg %p44
      %p139 = pneg %p68
      %p140 = pneg %p65
      %p141 = pneg %p94
      %p142 = pneg %p91
      %s143 = smul.u32 32, %s26
      %p144 = scmp.lt.s32.totalorder %s143, 63
      %s145 = scalar_select %p144, %s143, 63
      %s146 = smul.addr %s145, 8
      %s147 = scalar_lea.vmem %s5, %s146
      %s148 = smul.u32 32, %s26
      %p149 = scmp.lt.s32.totalorder %s148, 63
      %s150 = scalar_select %p149, %s148, 63
      %s151 = smul.addr %s150, 8
      %s152 = scalar_lea.vmem %s2, %s151
      %s153 = smul.u32 32, %s26
      %s154 = smul.u32 32, %s26
      %p155 = scmp.lt.s32.totalorder %s154, 63
      %s156 = scalar_select %p155, %s154, 63
      %s157 = smul.addr %s156, 8
      %s158 = scalar_lea.vmem %s5, %s157
      %s159 = smul.u32 32, %s26
      %s161 = smul.u32 %s26, 256
      loop: start=0, step=1, limit=256
      $region29: #{tpu_custom_call.1} parent=27 // loop_pre_header
        _
      $region30: #{tpu_custom_call.1} parent=27 // loop_header
        %s163 = sphi 0, %s167
        %p164 = scmp.ge.s32.totalorder %s163, 256
      $region31: #{tpu_custom_call.1} parent=27 // loop_header_branch
        %166 = sbr.rel (%p164) target = $region35
      $region32: #{tpu_custom_call.1} parent=27 // loop_body
        %s168 = sadd.s32 %s161, %s163
        %s169 = sld [smem:[#allocation6 + %s168]]
        %s170 = sld [smem:[#allocation7 + %s168]]
        %s171 = scalar_lea.vmem %s3, %s169
        %s172 = scalar_lea.vmem [#allocation2], %s163
        %p174 = scmp.lt.u32.totalorder 1, 8
        %p175 = pneg %p174
        // Predicated region
        $region36: #{tpu_custom_call.1} parent=32 // pred_check
          _
        $region37: #{tpu_custom_call.1} parent=32 // pred_check_branch
          %177 = sbr.rel (%p174) target = $region39
        $region38: #{tpu_custom_call.1} parent=32 // pred_region
          %s193 = sand.u32 1, 7
          %p194 = scmp.eq.s32.totalorder %s193, 0
          %p195 = pneg %p194
          // Predicated region
          $region51: #{tpu_custom_call.1} parent=38 // pred_check
            _
          $region52: #{tpu_custom_call.1} parent=38 // pred_check_branch
            %197 = sbr.rel (%p194) target = $region54
          $region53: #{tpu_custom_call.1} parent=38 // pred_region
            %s198 = sand.u32 1, 7
            %s199 = ssub.s32 1, %s198
            %s200 = scalar_lea.vmem %s171, %s199
            %s201 = ssub.s32 1, %s198
            %s202 = scalar_lea.vmem %s172, %s201 [#allocation2]
            %s203 = sshll.u32 1, %s198
            %s204 = ssub.s32 %s203, 1
            loop: start=0, step=1, limit=1
            $region55: #{tpu_custom_call.1} parent=53 // loop_pre_header
              _
            $region56: #{tpu_custom_call.1} parent=53 // loop_header
              %s206 = sphi 0, %s210
              %p207 = scmp.ge.s32.totalorder %s206, 1
              %s211 = sphi %s200, %s200
              %s212 = sphi %s202, %s202
            $region57: #{tpu_custom_call.1} parent=53 // loop_header_branch
              %209 = sbr.rel (%p207) target = $region61
            $region58: #{tpu_custom_call.1} parent=53 // loop_body
              %v213 = vld [vmem:[%s211] sm:%s204]
              %214 = vst [vmem:[%s212] sm:%s204] %v213
            $region59: #{tpu_custom_call.1} parent=53 // loop_footer
              %s210 = sadd.s32 1, %s206
            $region60: #{tpu_custom_call.1} parent=53 // loop_footer_branch
              %205 = sbr.rel target = $region56
            $region61: #{tpu_custom_call.1} parent=53 // loop_exit
              _
          $region54: #{tpu_custom_call.1} parent=38 // pred_fallthru
            _
        $region39: #{tpu_custom_call.1} parent=32 // pred_fallthru
          _
        // Predicated region
        $region40: #{tpu_custom_call.1} parent=32 // pred_check
          %p178 = pneg %p174
        $region41: #{tpu_custom_call.1} parent=32 // pred_check_branch
          %180 = sbr.rel (%p178) target = $region43
        $region42: #{tpu_custom_call.1} parent=32 // pred_region
          %s181 = sshll.u32 1, 1
          %s182 = ssub.s32 %s181, 1
          loop: start=0, step=1, limit=1
          $region44: #{tpu_custom_call.1} parent=42 // loop_pre_header
            _
          $region45: #{tpu_custom_call.1} parent=42 // loop_header
            %s184 = sphi 0, %s188
            %p185 = scmp.ge.s32.totalorder %s184, 1
            %s189 = sphi %s171, %s171
            %s190 = sphi %s172, %s172
          $region46: #{tpu_custom_call.1} parent=42 // loop_header_branch
            %187 = sbr.rel (%p185) target = $region50
          $region47: #{tpu_custom_call.1} parent=42 // loop_body
            %v191 = vld [vmem:[%s189] sm:%s182]
            %192 = vst [vmem:[%s190] sm:%s182] %v191
          $region48: #{tpu_custom_call.1} parent=42 // loop_footer
            %s188 = sadd.s32 1, %s184
          $region49: #{tpu_custom_call.1} parent=42 // loop_footer_branch
            %183 = sbr.rel target = $region45
          $region50: #{tpu_custom_call.1} parent=42 // loop_exit
            _
        $region43: #{tpu_custom_call.1} parent=32 // pred_fallthru
          _
        // Predicated region
        $region62: #{tpu_custom_call.1} parent=32 // pred_check
          _
        $region63: #{tpu_custom_call.1} parent=32 // pred_check_branch
          %217 = sbr.rel (0) target = $region65
        $region64: #{tpu_custom_call.1} parent=32 // pred_region
          %218 = vsyncadd [#allocation4], 16
        $region65: #{tpu_custom_call.1} parent=32 // pred_fallthru
          _
        %s219 = scalar_lea.vmem %s3, %s170
        %s220 = scalar_lea.vmem [#allocation3], %s163
        %s221 = scalar_lea.sflag [#allocation4], 1
        %p223 = scmp.lt.u32.totalorder 1, 8
        %p224 = pneg %p223
        // Predicated region
        $region66: #{tpu_custom_call.1} parent=32 // pred_check
          _
        $region67: #{tpu_custom_call.1} parent=32 // pred_check_branch
          %226 = sbr.rel (%p223) target = $region69
        $region68: #{tpu_custom_call.1} parent=32 // pred_region
          %s242 = sand.u32 1, 7
          %p243 = scmp.eq.s32.totalorder %s242, 0
          %p244 = pneg %p243
          // Predicated region
          $region81: #{tpu_custom_call.1} parent=68 // pred_check
            _
          $region82: #{tpu_custom_call.1} parent=68 // pred_check_branch
            %246 = sbr.rel (%p243) target = $region84
          $region83: #{tpu_custom_call.1} parent=68 // pred_region
            %s247 = sand.u32 1, 7
            %s248 = ssub.s32 1, %s247
            %s249 = scalar_lea.vmem %s219, %s248
            %s250 = ssub.s32 1, %s247
            %s251 = scalar_lea.vmem %s220, %s250 [#allocation3]
            %s252 = sshll.u32 1, %s247
            %s253 = ssub.s32 %s252, 1
            loop: start=0, step=1, limit=1
            $region85: #{tpu_custom_call.1} parent=83 // loop_pre_header
              _
            $region86: #{tpu_custom_call.1} parent=83 // loop_header
              %s255 = sphi 0, %s259
              %p256 = scmp.ge.s32.totalorder %s255, 1
              %s260 = sphi %s249, %s249
              %s261 = sphi %s251, %s251
            $region87: #{tpu_custom_call.1} parent=83 // loop_header_branch
              %258 = sbr.rel (%p256) target = $region91
            $region88: #{tpu_custom_call.1} parent=83 // loop_body
              %v262 = vld [vmem:[%s260] sm:%s253]
              %263 = vst [vmem:[%s261] sm:%s253] %v262
            $region89: #{tpu_custom_call.1} parent=83 // loop_footer
              %s259 = sadd.s32 1, %s255
            $region90: #{tpu_custom_call.1} parent=83 // loop_footer_branch
              %254 = sbr.rel target = $region86
            $region91: #{tpu_custom_call.1} parent=83 // loop_exit
              _
          $region84: #{tpu_custom_call.1} parent=68 // pred_fallthru
            _
        $region69: #{tpu_custom_call.1} parent=32 // pred_fallthru
          _
        // Predicated region
        $region70: #{tpu_custom_call.1} parent=32 // pred_check
          %p227 = pneg %p223
        $region71: #{tpu_custom_call.1} parent=32 // pred_check_branch
          %229 = sbr.rel (%p227) target = $region73
        $region72: #{tpu_custom_call.1} parent=32 // pred_region
          %s230 = sshll.u32 1, 1
          %s231 = ssub.s32 %s230, 1
          loop: start=0, step=1, limit=1
          $region74: #{tpu_custom_call.1} parent=72 // loop_pre_header
            _
          $region75: #{tpu_custom_call.1} parent=72 // loop_header
            %s233 = sphi 0, %s237
            %p234 = scmp.ge.s32.totalorder %s233, 1
            %s238 = sphi %s219, %s219
            %s239 = sphi %s220, %s220
          $region76: #{tpu_custom_call.1} parent=72 // loop_header_branch
            %236 = sbr.rel (%p234) target = $region80
          $region77: #{tpu_custom_call.1} parent=72 // loop_body
            %v240 = vld [vmem:[%s238] sm:%s231]
            %241 = vst [vmem:[%s239] sm:%s231] %v240
          $region78: #{tpu_custom_call.1} parent=72 // loop_footer
            %s237 = sadd.s32 1, %s233
          $region79: #{tpu_custom_call.1} parent=72 // loop_footer_branch
            %232 = sbr.rel target = $region75
          $region80: #{tpu_custom_call.1} parent=72 // loop_exit
            _
        $region73: #{tpu_custom_call.1} parent=32 // pred_fallthru
          _
        // Predicated region
        $region92: #{tpu_custom_call.1} parent=32 // pred_check
          _
        $region93: #{tpu_custom_call.1} parent=32 // pred_check_branch
          %266 = sbr.rel (0) target = $region95
        $region94: #{tpu_custom_call.1} parent=32 // pred_region
          %267 = vsyncadd %s221, 16
        $region95: #{tpu_custom_call.1} parent=32 // pred_fallthru
          _
      $region33: #{tpu_custom_call.1} parent=27 // loop_footer
        %s167 = sadd.s32 1, %s163
      $region34: #{tpu_custom_call.1} parent=27 // loop_footer_branch
        %162 = sbr.rel target = $region30
      $region35: #{tpu_custom_call.1} parent=27 // loop_exit
        _
      %v268 = vld [vmem:[%s152] sm:$0xff]
      %v269 = vld [vmem:[%s152 + $0x8] sm:$0xff]
      %v270 = vld [vmem:[%s152 + $0x10] sm:$0xff]
      %v271 = vld [vmem:[%s152 + $0x18] sm:$0xff]
      %v272 = vld [vmem:[%s152 + $0x20] sm:$0xff]
      %v273 = vld [vmem:[%s152 + $0x28] sm:$0xff]
      %v274 = vld [vmem:[%s152 + $0x30] sm:$0xff]
      %v275 = vld [vmem:[%s152 + $0x38] sm:$0xff]
      %v276 = vld [vmem:[%s152 + $0x40] sm:$0xff]
      %v277 = vld [vmem:[%s152 + $0x48] sm:$0xff]
      %v278 = vld [vmem:[%s152 + $0x50] sm:$0xff]
      %v279 = vld [vmem:[%s152 + $0x58] sm:$0xff]
      %v280 = vld [vmem:[%s152 + $0x60] sm:$0xff]
      %v281 = vld [vmem:[%s152 + $0x68] sm:$0xff]
      %v282 = vld [vmem:[%s152 + $0x70] sm:$0xff]
      %v283 = vld [vmem:[%s152 + $0x78] sm:$0xff]
      %v284 = vld [vmem:[%s152 + $0x80] sm:$0xff]
      %v285 = vld [vmem:[%s152 + $0x88] sm:$0xff]
      %v286 = vld [vmem:[%s152 + $0x90] sm:$0xff]
      %v287 = vld [vmem:[%s152 + $0x98] sm:$0xff]
      %v288 = vld [vmem:[%s152 + $0xa0] sm:$0xff]
      %v289 = vld [vmem:[%s152 + $0xa8] sm:$0xff]
      %v290 = vld [vmem:[%s152 + $0xb0] sm:$0xff]
      %v291 = vld [vmem:[%s152 + $0xb8] sm:$0xff]
      %v292 = vld [vmem:[%s152 + $0xc0] sm:$0xff]
      %v293 = vld [vmem:[%s152 + $0xc8] sm:$0xff]
      %v294 = vld [vmem:[%s152 + $0xd0] sm:$0xff]
      %v295 = vld [vmem:[%s152 + $0xd8] sm:$0xff]
      %v296 = vld [vmem:[%s152 + $0xe0] sm:$0xff]
      %v297 = vld [vmem:[%s152 + $0xe8] sm:$0xff]
      %v298 = vld [vmem:[%s152 + $0xf0] sm:$0xff]
      %v299 = vld [vmem:[%s152 + $0xf8] sm:$0xff]
      %v300 = vlaneseq
      %v301 = vand.u32 %v300, 127
      %302 = vset.pattern.permute.xlu0 0
      %303 = vperm.xlu0 %302, %v268
      %v304 = vpop.permute.xlu0 %303
      %305 = vset.pattern.permute.xlu0 0
      %306 = vperm.xlu0 %305, %v269
      %v307 = vpop.permute.xlu0 %306
      %308 = vset.pattern.permute.xlu0 0
      %309 = vperm.xlu0 %308, %v270
      %v310 = vpop.permute.xlu0 %309
      %311 = vset.pattern.permute.xlu0 0
      %312 = vperm.xlu0 %311, %v271
      %v313 = vpop.permute.xlu0 %312
      %314 = vset.pattern.permute.xlu0 0
      %315 = vperm.xlu0 %314, %v272
      %v316 = vpop.permute.xlu0 %315
      %317 = vset.pattern.permute.xlu0 0
      %318 = vperm.xlu0 %317, %v273
      %v319 = vpop.permute.xlu0 %318
      %320 = vset.pattern.permute.xlu0 0
      %321 = vperm.xlu0 %320, %v274
      %v322 = vpop.permute.xlu0 %321
      %323 = vset.pattern.permute.xlu0 0
      %324 = vperm.xlu0 %323, %v275
      %v325 = vpop.permute.xlu0 %324
      %326 = vset.pattern.permute.xlu0 0
      %327 = vperm.xlu0 %326, %v276
      %v328 = vpop.permute.xlu0 %327
      %329 = vset.pattern.permute.xlu0 0
      %330 = vperm.xlu0 %329, %v277
      %v331 = vpop.permute.xlu0 %330
      %332 = vset.pattern.permute.xlu0 0
      %333 = vperm.xlu0 %332, %v278
      %v334 = vpop.permute.xlu0 %333
      %335 = vset.pattern.permute.xlu0 0
      %336 = vperm.xlu0 %335, %v279
      %v337 = vpop.permute.xlu0 %336
      %338 = vset.pattern.permute.xlu0 0
      %339 = vperm.xlu0 %338, %v280
      %v340 = vpop.permute.xlu0 %339
      %341 = vset.pattern.permute.xlu0 0
      %342 = vperm.xlu0 %341, %v281
      %v343 = vpop.permute.xlu0 %342
      %344 = vset.pattern.permute.xlu0 0
      %345 = vperm.xlu0 %344, %v282
      %v346 = vpop.permute.xlu0 %345
      %347 = vset.pattern.permute.xlu0 0
      %348 = vperm.xlu0 %347, %v283
      %v349 = vpop.permute.xlu0 %348
      %350 = vset.pattern.permute.xlu0 0
      %351 = vperm.xlu0 %350, %v284
      %v352 = vpop.permute.xlu0 %351
      %353 = vset.pattern.permute.xlu0 0
      %354 = vperm.xlu0 %353, %v285
      %v355 = vpop.permute.xlu0 %354
      %356 = vset.pattern.permute.xlu0 0
      %357 = vperm.xlu0 %356, %v286
      %v358 = vpop.permute.xlu0 %357
      %359 = vset.pattern.permute.xlu0 0
      %360 = vperm.xlu0 %359, %v287
      %v361 = vpop.permute.xlu0 %360
      %362 = vset.pattern.permute.xlu0 0
      %363 = vperm.xlu0 %362, %v288
      %v364 = vpop.permute.xlu0 %363
      %365 = vset.pattern.permute.xlu0 0
      %366 = vperm.xlu0 %365, %v289
      %v367 = vpop.permute.xlu0 %366
      %368 = vset.pattern.permute.xlu0 0
      %369 = vperm.xlu0 %368, %v290
      %v370 = vpop.permute.xlu0 %369
      %371 = vset.pattern.permute.xlu0 0
      %372 = vperm.xlu0 %371, %v291
      %v373 = vpop.permute.xlu0 %372
      %374 = vset.pattern.permute.xlu0 0
      %375 = vperm.xlu0 %374, %v292
      %v376 = vpop.permute.xlu0 %375
      %377 = vset.pattern.permute.xlu0 0
      %378 = vperm.xlu0 %377, %v293
      %v379 = vpop.permute.xlu0 %378
      %380 = vset.pattern.permute.xlu0 0
      %381 = vperm.xlu0 %380, %v294
      %v382 = vpop.permute.xlu0 %381
      %383 = vset.pattern.permute.xlu0 0
      %384 = vperm.xlu0 %383, %v295
      %v385 = vpop.permute.xlu0 %384
      %386 = vset.pattern.permute.xlu0 0
      %387 = vperm.xlu0 %386, %v296
      %v388 = vpop.permute.xlu0 %387
      %389 = vset.pattern.permute.xlu0 0
      %390 = vperm.xlu0 %389, %v297
      %v391 = vpop.permute.xlu0 %390
      %392 = vset.pattern.permute.xlu0 0
      %393 = vperm.xlu0 %392, %v298
      %v394 = vpop.permute.xlu0 %393
      %395 = vset.pattern.permute.xlu0 0
      %396 = vperm.xlu0 %395, %v299
      %v397 = vpop.permute.xlu0 %396
      %vm398 = vcmp.eq.s32.totalorder %v301, %v304
      %vm399 = vcmp.eq.s32.totalorder %v301, %v307
      %vm400 = vcmp.eq.s32.totalorder %v301, %v310
      %vm401 = vcmp.eq.s32.totalorder %v301, %v313
      %vm402 = vcmp.eq.s32.totalorder %v301, %v316
      %vm403 = vcmp.eq.s32.totalorder %v301, %v319
      %vm404 = vcmp.eq.s32.totalorder %v301, %v322
      %vm405 = vcmp.eq.s32.totalorder %v301, %v325
      %vm406 = vcmp.eq.s32.totalorder %v301, %v328
      %vm407 = vcmp.eq.s32.totalorder %v301, %v331
      %vm408 = vcmp.eq.s32.totalorder %v301, %v334
      %vm409 = vcmp.eq.s32.totalorder %v301, %v337
      %vm410 = vcmp.eq.s32.totalorder %v301, %v340
      %vm411 = vcmp.eq.s32.totalorder %v301, %v343
      %vm412 = vcmp.eq.s32.totalorder %v301, %v346
      %vm413 = vcmp.eq.s32.totalorder %v301, %v349
      %vm414 = vcmp.eq.s32.totalorder %v301, %v352
      %vm415 = vcmp.eq.s32.totalorder %v301, %v355
      %vm416 = vcmp.eq.s32.totalorder %v301, %v358
      %vm417 = vcmp.eq.s32.totalorder %v301, %v361
      %vm418 = vcmp.eq.s32.totalorder %v301, %v364
      %vm419 = vcmp.eq.s32.totalorder %v301, %v367
      %vm420 = vcmp.eq.s32.totalorder %v301, %v370
      %vm421 = vcmp.eq.s32.totalorder %v301, %v373
      %vm422 = vcmp.eq.s32.totalorder %v301, %v376
      %vm423 = vcmp.eq.s32.totalorder %v301, %v379
      %vm424 = vcmp.eq.s32.totalorder %v301, %v382
      %vm425 = vcmp.eq.s32.totalorder %v301, %v385
      %vm426 = vcmp.eq.s32.totalorder %v301, %v388
      %vm427 = vcmp.eq.s32.totalorder %v301, %v391
      %vm428 = vcmp.eq.s32.totalorder %v301, %v394
      %vm429 = vcmp.eq.s32.totalorder %v301, %v397
      %v430 = vsel %vm398, 1, 0
      %v431 = vsel %vm399, 1, 0
      %v432 = vsel %vm400, 1, 0
      %v433 = vsel %vm401, 1, 0
      %v434 = vsel %vm402, 1, 0
      %v435 = vsel %vm403, 1, 0
      %v436 = vsel %vm404, 1, 0
      %v437 = vsel %vm405, 1, 0
      %v438 = vsel %vm406, 1, 0
      %v439 = vsel %vm407, 1, 0
      %v440 = vsel %vm408, 1, 0
      %v441 = vsel %vm409, 1, 0
      %v442 = vsel %vm410, 1, 0
      %v443 = vsel %vm411, 1, 0
      %v444 = vsel %vm412, 1, 0
      %v445 = vsel %vm413, 1, 0
      %v446 = vsel %vm414, 1, 0
      %v447 = vsel %vm415, 1, 0
      %v448 = vsel %vm416, 1, 0
      %v449 = vsel %vm417, 1, 0
      %v450 = vsel %vm418, 1, 0
      %v451 = vsel %vm419, 1, 0
      %v452 = vsel %vm420, 1, 0
      %v453 = vsel %vm421, 1, 0
      %v454 = vsel %vm422, 1, 0
      %v455 = vsel %vm423, 1, 0
      %v456 = vsel %vm424, 1, 0
      %v457 = vsel %vm425, 1, 0
      %v458 = vsel %vm426, 1, 0
      %v459 = vsel %vm427, 1, 0
      %v460 = vsel %vm428, 1, 0
      %v461 = vsel %vm429, 1, 0
      %v462 = vcvt.s32.f32 %v430
      %v463 = vcvt.s32.f32 %v431
      %v464 = vcvt.s32.f32 %v432
      %v465 = vcvt.s32.f32 %v433
      %v466 = vcvt.s32.f32 %v434
      %v467 = vcvt.s32.f32 %v435
      %v468 = vcvt.s32.f32 %v436
      %v469 = vcvt.s32.f32 %v437
      %v470 = vcvt.s32.f32 %v438
      %v471 = vcvt.s32.f32 %v439
      %v472 = vcvt.s32.f32 %v440
      %v473 = vcvt.s32.f32 %v441
      %v474 = vcvt.s32.f32 %v442
      %v475 = vcvt.s32.f32 %v443
      %v476 = vcvt.s32.f32 %v444
      %v477 = vcvt.s32.f32 %v445
      %v478 = vcvt.s32.f32 %v446
      %v479 = vcvt.s32.f32 %v447
      %v480 = vcvt.s32.f32 %v448
      %v481 = vcvt.s32.f32 %v449
      %v482 = vcvt.s32.f32 %v450
      %v483 = vcvt.s32.f32 %v451
      %v484 = vcvt.s32.f32 %v452
      %v485 = vcvt.s32.f32 %v453
      %v486 = vcvt.s32.f32 %v454
      %v487 = vcvt.s32.f32 %v455
      %v488 = vcvt.s32.f32 %v456
      %v489 = vcvt.s32.f32 %v457
      %v490 = vcvt.s32.f32 %v458
      %v491 = vcvt.s32.f32 %v459
      %v492 = vcvt.s32.f32 %v460
      %v493 = vcvt.s32.f32 %v461
      %v494 = vpack.c.bf16 %v463, %v462
      %v495 = vpack.c.bf16 %v465, %v464
      %v496 = vpack.c.bf16 %v467, %v466
      %v497 = vpack.c.bf16 %v469, %v468
      %v498 = vpack.c.bf16 %v471, %v470
      %v499 = vpack.c.bf16 %v473, %v472
      %v500 = vpack.c.bf16 %v475, %v474
      %v501 = vpack.c.bf16 %v477, %v476
      %v502 = vpack.c.bf16 %v479, %v478
      %v503 = vpack.c.bf16 %v481, %v480
      %v504 = vpack.c.bf16 %v483, %v482
      %v505 = vpack.c.bf16 %v485, %v484
      %v506 = vpack.c.bf16 %v487, %v486
      %v507 = vpack.c.bf16 %v489, %v488
      %v508 = vpack.c.bf16 %v491, %v490
      %v509 = vpack.c.bf16 %v493, %v492
      %v510 = vld [vmem:[%s4] sm:$0xff]
      %v511 = vld [vmem:[%s4 + $0x8] sm:$0xf]
      %v512 = vld [vmem:[%s4 + $0xc] sm:$0xff]
      %v513 = vld [vmem:[%s4 + $0x14] sm:$0xf]
      %v514 = vld [vmem:[%s4 + $0x18] sm:$0xff]
      %v515 = vld [vmem:[%s4 + $0x20] sm:$0xf]
      %v516 = vld [vmem:[%s4 + $0x24] sm:$0xff]
      %v517 = vld [vmem:[%s4 + $0x2c] sm:$0xf]
      %v518 = vld [vmem:[%s4 + $0x30] sm:$0xff]
      %v519 = vld [vmem:[%s4 + $0x38] sm:$0xf]
      %v520 = vld [vmem:[%s4 + $0x3c] sm:$0xff]
      %v521 = vld [vmem:[%s4 + $0x44] sm:$0xf]
      %v522 = vld [vmem:[%s4 + $0x48] sm:$0xff]
      %v523 = vld [vmem:[%s4 + $0x50] sm:$0xf]
      %v524 = vld [vmem:[%s4 + $0x54] sm:$0xff]
      %v525 = vld [vmem:[%s4 + $0x5c] sm:$0xf]
      %v526 = vld [vmem:[%s4 + $0x60] sm:$0xff]
      %v527 = vld [vmem:[%s4 + $0x68] sm:$0xf]
      %v528 = vld [vmem:[%s4 + $0x6c] sm:$0xff]
      %v529 = vld [vmem:[%s4 + $0x74] sm:$0xf]
      %v530 = vld [vmem:[%s4 + $0x78] sm:$0xff]
      %v531 = vld [vmem:[%s4 + $0x80] sm:$0xf]
      %v532 = vld [vmem:[%s4 + $0x84] sm:$0xff]
      %v533 = vld [vmem:[%s4 + $0x8c] sm:$0xf]
      %v534 = vld [vmem:[%s4 + $0x90] sm:$0xff]
      %v535 = vld [vmem:[%s4 + $0x98] sm:$0xf]
      %v536 = vld [vmem:[%s4 + $0x9c] sm:$0xff]
      %v537 = vld [vmem:[%s4 + $0xa4] sm:$0xf]
      %v538 = vld [vmem:[%s4 + $0xa8] sm:$0xff]
      %v539 = vld [vmem:[%s4 + $0xb0] sm:$0xf]
      %v540 = vld [vmem:[%s4 + $0xb4] sm:$0xff]
      %v541 = vld [vmem:[%s4 + $0xbc] sm:$0xf]
      %v574 = vunpack.c.l.b16 %v510
      %v575 = vunpack.c.h.b16 %v510
      %v576 = vunpack.c.l.b16 %v511
      %v577 = vunpack.c.l.b16 %v512
      %v578 = vunpack.c.h.b16 %v512
      %v579 = vunpack.c.l.b16 %v513
      %v580 = vunpack.c.l.b16 %v514
      %v581 = vunpack.c.h.b16 %v514
      %v582 = vunpack.c.l.b16 %v515
      %v583 = vunpack.c.l.b16 %v516
      %v584 = vunpack.c.h.b16 %v516
      %v585 = vunpack.c.l.b16 %v517
      %v586 = vunpack.c.l.b16 %v518
      %v587 = vunpack.c.h.b16 %v518
      %v588 = vunpack.c.l.b16 %v519
      %v589 = vunpack.c.l.b16 %v520
      %v590 = vunpack.c.h.b16 %v520
      %v591 = vunpack.c.l.b16 %v521
      %v592 = vunpack.c.l.b16 %v522
      %v593 = vunpack.c.h.b16 %v522
      %v594 = vunpack.c.l.b16 %v523
      %v595 = vunpack.c.l.b16 %v524
      %v596 = vunpack.c.h.b16 %v524
      %v597 = vunpack.c.l.b16 %v525
      %v598 = vunpack.c.l.b16 %v526
      %v599 = vunpack.c.h.b16 %v526
      %v600 = vunpack.c.l.b16 %v527
      %v601 = vunpack.c.l.b16 %v528
      %v602 = vunpack.c.h.b16 %v528
      %v603 = vunpack.c.l.b16 %v529
      %v604 = vunpack.c.l.b16 %v530
      %v605 = vunpack.c.h.b16 %v530
      %v606 = vunpack.c.l.b16 %v531
      %v607 = vunpack.c.l.b16 %v532
      %v608 = vunpack.c.h.b16 %v532
      %v609 = vunpack.c.l.b16 %v533
      %v610 = vunpack.c.l.b16 %v534
      %v611 = vunpack.c.h.b16 %v534
      %v612 = vunpack.c.l.b16 %v535
      %v613 = vunpack.c.l.b16 %v536
      %v614 = vunpack.c.h.b16 %v536
      %v615 = vunpack.c.l.b16 %v537
      %v616 = vunpack.c.l.b16 %v538
      %v617 = vunpack.c.h.b16 %v538
      %v618 = vunpack.c.l.b16 %v539
      %v619 = vunpack.c.l.b16 %v540
      %v620 = vunpack.c.h.b16 %v540
      %v621 = vunpack.c.l.b16 %v541
      %v622 = vpack.c.b16 %v577, %v574
      %v623 = vpack.c.b16 %v578, %v575
      %v624 = vpack.c.b16 %v579, %v576
      %v625 = vpack.c.b16 %v583, %v580
      %v626 = vpack.c.b16 %v584, %v581
      %v627 = vpack.c.b16 %v585, %v582
      %v628 = vpack.c.b16 %v589, %v586
      %v629 = vpack.c.b16 %v590, %v587
      %v630 = vpack.c.b16 %v591, %v588
      %v631 = vpack.c.b16 %v595, %v592
      %v632 = vpack.c.b16 %v596, %v593
      %v633 = vpack.c.b16 %v597, %v594
      %v634 = vpack.c.b16 %v601, %v598
      %v635 = vpack.c.b16 %v602, %v599
      %v636 = vpack.c.b16 %v603, %v600
      %v637 = vpack.c.b16 %v607, %v604
      %v638 = vpack.c.b16 %v608, %v605
      %v639 = vpack.c.b16 %v609, %v606
      %v640 = vpack.c.b16 %v613, %v610
      %v641 = vpack.c.b16 %v614, %v611
      %v642 = vpack.c.b16 %v615, %v612
      %v643 = vpack.c.b16 %v619, %v616
      %v644 = vpack.c.b16 %v620, %v617
      %v645 = vpack.c.b16 %v621, %v618
      %670 = vmatprep.subr.bf16.mxu0 %v644
      %671 = vmatpush1.bf16.msra.mxu0 %v643
      %672 = vmatprep.subr.bf16.mxu0 %v641
      %673 = vmatpush1.bf16.msra.mxu0 %v640
      %674 = vmatprep.subr.bf16.mxu0 %v638
      %675 = vmatpush1.bf16.msra.mxu0 %v637
      %676 = vmatprep.subr.bf16.mxu0 %v635
      %677 = vmatpush1.bf16.msra.mxu0 %v634
      %678 = vmatprep.subr.bf16.mxu0 %v632
      %679 = vmatpush1.bf16.msra.mxu0 %v631
      %680 = vmatprep.subr.bf16.mxu0 %v629
      %681 = vmatpush1.bf16.msra.mxu0 %v628
      %682 = vmatprep.subr.bf16.mxu0 %v626
      %683 = vmatpush1.bf16.msra.mxu0 %v625
      %684 = vmatprep.subr.bf16.mxu0 %v623
      %685 = vmatpush1.bf16.msra.mxu0 %v622
      %686 = vmatprep.subr.bf16.mxu0 0
      %687 = vmatpush2.bf16.msra.mxu0 0
      %688 = vmatprep.subr.bf16.mxu0 0
      %689 = vmatpush2.bf16.msra.mxu0 0
      %690 = vmatprep.subr.bf16.mxu0 0
      %691 = vmatpush2.bf16.msra.mxu0 0
      %692 = vmatprep.subr.bf16.mxu0 0
      %693 = vmatpush2.bf16.msra.mxu0 0
      %694 = vmatprep.subr.bf16.mxu0 0
      %695 = vmatpush2.bf16.msra.mxu0 0
      %696 = vmatprep.subr.bf16.mxu0 0
      %697 = vmatpush2.bf16.msra.mxu0 0
      %698 = vmatprep.subr.bf16.mxu0 0
      %699 = vmatpush2.bf16.msra.mxu0 0
      %700 = vmatprep.subr.bf16.mxu0 0
      %701 = vmatpush2.bf16.msra.mxu0 0
      %702 = vmatprep.mubr.bf16.mxu0 0
      %703 = vmatmul.mubr.bf16.gmra.mxu0 %v494
      %v704 = vpop.f32.mrf.mxu0
      %v705 = vadd.f32 0.0, %v704
      %v706 = vpop.f32.mrf.mxu0
      %v707 = vadd.f32 0.0, %v706
      %v708 = vpop.f32.mrf.mxu0
      %v709 = vadd.f32 0.0, %v708
      %v710 = vpop.f32.mrf.mxu0
      %v711 = vadd.f32 0.0, %v710
      %712 = vmatprep.mubr.bf16.mxu0 0
      %713 = vmatmul.mubr.bf16.gmra.mxu0 %v495
      %v714 = vpop.f32.mrf.mxu0
      %v715 = vadd.f32 0.0, %v714
      %v716 = vpop.f32.mrf.mxu0
      %v717 = vadd.f32 0.0, %v716
      %v718 = vpop.f32.mrf.mxu0
      %v719 = vadd.f32 0.0, %v718
      %v720 = vpop.f32.mrf.mxu0
      %v721 = vadd.f32 0.0, %v720
      %722 = vmatprep.mubr.bf16.mxu0 0
      %723 = vmatmul.mubr.bf16.gmra.mxu0 %v496
      %v724 = vpop.f32.mrf.mxu0
      %v725 = vadd.f32 0.0, %v724
      %v726 = vpop.f32.mrf.mxu0
      %v727 = vadd.f32 0.0, %v726
      %v728 = vpop.f32.mrf.mxu0
      %v729 = vadd.f32 0.0, %v728
      %v730 = vpop.f32.mrf.mxu0
      %v731 = vadd.f32 0.0, %v730
      %732 = vmatprep.mubr.bf16.mxu0 0
      %733 = vmatmul.mubr.bf16.gmra.mxu0 %v497
      %v734 = vpop.f32.mrf.mxu0
      %v735 = vadd.f32 0.0, %v734
      %v736 = vpop.f32.mrf.mxu0
      %v737 = vadd.f32 0.0, %v736
      %v738 = vpop.f32.mrf.mxu0
      %v739 = vadd.f32 0.0, %v738
      %v740 = vpop.f32.mrf.mxu0
      %v741 = vadd.f32 0.0, %v740
      %742 = vmatprep.mubr.bf16.mxu0 0
      %743 = vmatmul.mubr.bf16.gmra.mxu0 %v498
      %v744 = vpop.f32.mrf.mxu0
      %v745 = vadd.f32 0.0, %v744
      %v746 = vpop.f32.mrf.mxu0
      %v747 = vadd.f32 0.0, %v746
      %v748 = vpop.f32.mrf.mxu0
      %v749 = vadd.f32 0.0, %v748
      %v750 = vpop.f32.mrf.mxu0
      %v751 = vadd.f32 0.0, %v750
      %752 = vmatprep.mubr.bf16.mxu0 0
      %753 = vmatmul.mubr.bf16.gmra.mxu0 %v499
      %v754 = vpop.f32.mrf.mxu0
      %v755 = vadd.f32 0.0, %v754
      %v756 = vpop.f32.mrf.mxu0
      %v757 = vadd.f32 0.0, %v756
      %v758 = vpop.f32.mrf.mxu0
      %v759 = vadd.f32 0.0, %v758
      %v760 = vpop.f32.mrf.mxu0
      %v761 = vadd.f32 0.0, %v760
      %762 = vmatprep.mubr.bf16.mxu0 0
      %763 = vmatmul.mubr.bf16.gmra.mxu0 %v500
      %v764 = vpop.f32.mrf.mxu0
      %v765 = vadd.f32 0.0, %v764
      %v766 = vpop.f32.mrf.mxu0
      %v767 = vadd.f32 0.0, %v766
      %v768 = vpop.f32.mrf.mxu0
      %v769 = vadd.f32 0.0, %v768
      %v770 = vpop.f32.mrf.mxu0
      %v771 = vadd.f32 0.0, %v770
      %772 = vmatprep.mubr.bf16.mxu0 0
      %773 = vmatmul.mubr.bf16.gmra.mxu0 %v501
      %v774 = vpop.f32.mrf.mxu0
      %v775 = vadd.f32 0.0, %v774
      %v776 = vpop.f32.mrf.mxu0
      %v777 = vadd.f32 0.0, %v776
      %v778 = vpop.f32.mrf.mxu0
      %v779 = vadd.f32 0.0, %v778
      %v780 = vpop.f32.mrf.mxu0
      %v781 = vadd.f32 0.0, %v780
      %782 = vmatprep.mubr.bf16.mxu0 0
      %783 = vmatmul.mubr.bf16.gmra.mxu0 %v502
      %v784 = vpop.f32.mrf.mxu0
      %v785 = vadd.f32 0.0, %v784
      %v786 = vpop.f32.mrf.mxu0
      %v787 = vadd.f32 0.0, %v786
      %v788 = vpop.f32.mrf.mxu0
      %v789 = vadd.f32 0.0, %v788
      %v790 = vpop.f32.mrf.mxu0
      %v791 = vadd.f32 0.0, %v790
      %792 = vmatprep.mubr.bf16.mxu0 0
      %793 = vmatmul.mubr.bf16.gmra.mxu0 %v503
      %v794 = vpop.f32.mrf.mxu0
      %v795 = vadd.f32 0.0, %v794
      %v796 = vpop.f32.mrf.mxu0
      %v797 = vadd.f32 0.0, %v796
      %v798 = vpop.f32.mrf.mxu0
      %v799 = vadd.f32 0.0, %v798
      %v800 = vpop.f32.mrf.mxu0
      %v801 = vadd.f32 0.0, %v800
      %802 = vmatprep.mubr.bf16.mxu0 0
      %803 = vmatmul.mubr.bf16.gmra.mxu0 %v504
      %v804 = vpop.f32.mrf.mxu0
      %v805 = vadd.f32 0.0, %v804
      %v806 = vpop.f32.mrf.mxu0
      %v807 = vadd.f32 0.0, %v806
      %v808 = vpop.f32.mrf.mxu0
      %v809 = vadd.f32 0.0, %v808
      %v810 = vpop.f32.mrf.mxu0
      %v811 = vadd.f32 0.0, %v810
      %812 = vmatprep.mubr.bf16.mxu0 0
      %813 = vmatmul.mubr.bf16.gmra.mxu0 %v505
      %v814 = vpop.f32.mrf.mxu0
      %v815 = vadd.f32 0.0, %v814
      %v816 = vpop.f32.mrf.mxu0
      %v817 = vadd.f32 0.0, %v816
      %v818 = vpop.f32.mrf.mxu0
      %v819 = vadd.f32 0.0, %v818
      %v820 = vpop.f32.mrf.mxu0
      %v821 = vadd.f32 0.0, %v820
      %822 = vmatprep.mubr.bf16.mxu0 0
      %823 = vmatmul.mubr.bf16.gmra.mxu0 %v506
      %v824 = vpop.f32.mrf.mxu0
      %v825 = vadd.f32 0.0, %v824
      %v826 = vpop.f32.mrf.mxu0
      %v827 = vadd.f32 0.0, %v826
      %v828 = vpop.f32.mrf.mxu0
      %v829 = vadd.f32 0.0, %v828
      %v830 = vpop.f32.mrf.mxu0
      %v831 = vadd.f32 0.0, %v830
      %832 = vmatprep.mubr.bf16.mxu0 0
      %833 = vmatmul.mubr.bf16.gmra.mxu0 %v507
      %v834 = vpop.f32.mrf.mxu0
      %v835 = vadd.f32 0.0, %v834
      %v836 = vpop.f32.mrf.mxu0
      %v837 = vadd.f32 0.0, %v836
      %v838 = vpop.f32.mrf.mxu0
      %v839 = vadd.f32 0.0, %v838
      %v840 = vpop.f32.mrf.mxu0
      %v841 = vadd.f32 0.0, %v840
      %842 = vmatprep.mubr.bf16.mxu0 0
      %843 = vmatmul.mubr.bf16.gmra.mxu0 %v508
      %v844 = vpop.f32.mrf.mxu0
      %v845 = vadd.f32 0.0, %v844
      %v846 = vpop.f32.mrf.mxu0
      %v847 = vadd.f32 0.0, %v846
      %v848 = vpop.f32.mrf.mxu0
      %v849 = vadd.f32 0.0, %v848
      %v850 = vpop.f32.mrf.mxu0
      %v851 = vadd.f32 0.0, %v850
      %852 = vmatprep.mubr.bf16.mxu0 0
      %853 = vmatmul.mubr.bf16.gmra.mxu0 %v509
      %v854 = vpop.f32.mrf.mxu0
      %v855 = vadd.f32 0.0, %v854
      %v856 = vpop.f32.mrf.mxu0
      %v857 = vadd.f32 0.0, %v856
      %v858 = vpop.f32.mrf.mxu0
      %v859 = vadd.f32 0.0, %v858
      %v860 = vpop.f32.mrf.mxu0
      %v861 = vadd.f32 0.0, %v860
      %862 = vdwg.mxu0
      %863 = vmatprep.subr.bf16.mxu0 0
      %864 = vmatpush1.bf16.msra.mxu0 %v645
      %865 = vmatprep.subr.bf16.mxu0 0
      %866 = vmatpush1.bf16.msra.mxu0 %v642
      %867 = vmatprep.subr.bf16.mxu0 0
      %868 = vmatpush1.bf16.msra.mxu0 %v639
      %869 = vmatprep.subr.bf16.mxu0 0
      %870 = vmatpush1.bf16.msra.mxu0 %v636
      %871 = vmatprep.subr.bf16.mxu0 0
      %872 = vmatpush1.bf16.msra.mxu0 %v633
      %873 = vmatprep.subr.bf16.mxu0 0
      %874 = vmatpush1.bf16.msra.mxu0 %v630
      %875 = vmatprep.subr.bf16.mxu0 0
      %876 = vmatpush1.bf16.msra.mxu0 %v627
      %877 = vmatprep.subr.bf16.mxu0 0
      %878 = vmatpush1.bf16.msra.mxu0 %v624
      %879 = vmatprep.subr.bf16.mxu0 0
      %880 = vmatpush2.bf16.msra.mxu0 0
      %881 = vmatprep.subr.bf16.mxu0 0
      %882 = vmatpush2.bf16.msra.mxu0 0
      %883 = vmatprep.subr.bf16.mxu0 0
      %884 = vmatpush2.bf16.msra.mxu0 0
      %885 = vmatprep.subr.bf16.mxu0 0
      %886 = vmatpush2.bf16.msra.mxu0 0
      %887 = vmatprep.subr.bf16.mxu0 0
      %888 = vmatpush2.bf16.msra.mxu0 0
      %889 = vmatprep.subr.bf16.mxu0 0
      %890 = vmatpush2.bf16.msra.mxu0 0
      %891 = vmatprep.subr.bf16.mxu0 0
      %892 = vmatpush2.bf16.msra.mxu0 0
      %893 = vmatprep.subr.bf16.mxu0 0
      %894 = vmatpush2.bf16.msra.mxu0 0
      %895 = vmatprep.mubr.bf16.mxu0 0
      %896 = vmatmul.mubr.bf16.gmra.mxu0 %v494
      %v897 = vpop.f32.mrf.mxu0
      %v898 = vadd.f32 0.0, %v897
      %v899 = vpop.f32.mrf.mxu0
      %v900 = vpop.f32.mrf.mxu0
      %v901 = vadd.f32 0.0, %v900
      %v902 = vpop.f32.mrf.mxu0
      %903 = vmatprep.mubr.bf16.mxu0 0
      %904 = vmatmul.mubr.bf16.gmra.mxu0 %v495
      %v905 = vpop.f32.mrf.mxu0
      %v906 = vadd.f32 0.0, %v905
      %v907 = vpop.f32.mrf.mxu0
      %v908 = vpop.f32.mrf.mxu0
      %v909 = vadd.f32 0.0, %v908
      %v910 = vpop.f32.mrf.mxu0
      %911 = vmatprep.mubr.bf16.mxu0 0
      %912 = vmatmul.mubr.bf16.gmra.mxu0 %v496
      %v913 = vpop.f32.mrf.mxu0
      %v914 = vadd.f32 0.0, %v913
      %v915 = vpop.f32.mrf.mxu0
      %v916 = vpop.f32.mrf.mxu0
      %v917 = vadd.f32 0.0, %v916
      %v918 = vpop.f32.mrf.mxu0
      %919 = vmatprep.mubr.bf16.mxu0 0
      %920 = vmatmul.mubr.bf16.gmra.mxu0 %v497
      %v921 = vpop.f32.mrf.mxu0
      %v922 = vadd.f32 0.0, %v921
      %v923 = vpop.f32.mrf.mxu0
      %v924 = vpop.f32.mrf.mxu0
      %v925 = vadd.f32 0.0, %v924
      %v926 = vpop.f32.mrf.mxu0
      %927 = vmatprep.mubr.bf16.mxu0 0
      %928 = vmatmul.mubr.bf16.gmra.mxu0 %v498
      %v929 = vpop.f32.mrf.mxu0
      %v930 = vadd.f32 0.0, %v929
      %v931 = vpop.f32.mrf.mxu0
      %v932 = vpop.f32.mrf.mxu0
      %v933 = vadd.f32 0.0, %v932
      %v934 = vpop.f32.mrf.mxu0
      %935 = vmatprep.mubr.bf16.mxu0 0
      %936 = vmatmul.mubr.bf16.gmra.mxu0 %v499
      %v937 = vpop.f32.mrf.mxu0
      %v938 = vadd.f32 0.0, %v937
      %v939 = vpop.f32.mrf.mxu0
      %v940 = vpop.f32.mrf.mxu0
      %v941 = vadd.f32 0.0, %v940
      %v942 = vpop.f32.mrf.mxu0
      %943 = vmatprep.mubr.bf16.mxu0 0
      %944 = vmatmul.mubr.bf16.gmra.mxu0 %v500
      %v945 = vpop.f32.mrf.mxu0
      %v946 = vadd.f32 0.0, %v945
      %v947 = vpop.f32.mrf.mxu0
      %v948 = vpop.f32.mrf.mxu0
      %v949 = vadd.f32 0.0, %v948
      %v950 = vpop.f32.mrf.mxu0
      %951 = vmatprep.mubr.bf16.mxu0 0
      %952 = vmatmul.mubr.bf16.gmra.mxu0 %v501
      %v953 = vpop.f32.mrf.mxu0
      %v954 = vadd.f32 0.0, %v953
      %v955 = vpop.f32.mrf.mxu0
      %v956 = vpop.f32.mrf.mxu0
      %v957 = vadd.f32 0.0, %v956
      %v958 = vpop.f32.mrf.mxu0
      %959 = vmatprep.mubr.bf16.mxu0 0
      %960 = vmatmul.mubr.bf16.gmra.mxu0 %v502
      %v961 = vpop.f32.mrf.mxu0
      %v962 = vadd.f32 0.0, %v961
      %v963 = vpop.f32.mrf.mxu0
      %v964 = vpop.f32.mrf.mxu0
      %v965 = vadd.f32 0.0, %v964
      %v966 = vpop.f32.mrf.mxu0
      %967 = vmatprep.mubr.bf16.mxu0 0
      %968 = vmatmul.mubr.bf16.gmra.mxu0 %v503
      %v969 = vpop.f32.mrf.mxu0
      %v970 = vadd.f32 0.0, %v969
      %v971 = vpop.f32.mrf.mxu0
      %v972 = vpop.f32.mrf.mxu0
      %v973 = vadd.f32 0.0, %v972
      %v974 = vpop.f32.mrf.mxu0
      %975 = vmatprep.mubr.bf16.mxu0 0
      %976 = vmatmul.mubr.bf16.gmra.mxu0 %v504
      %v977 = vpop.f32.mrf.mxu0
      %v978 = vadd.f32 0.0, %v977
      %v979 = vpop.f32.mrf.mxu0
      %v980 = vpop.f32.mrf.mxu0
      %v981 = vadd.f32 0.0, %v980
      %v982 = vpop.f32.mrf.mxu0
      %983 = vmatprep.mubr.bf16.mxu0 0
      %984 = vmatmul.mubr.bf16.gmra.mxu0 %v505
      %v985 = vpop.f32.mrf.mxu0
      %v986 = vadd.f32 0.0, %v985
      %v987 = vpop.f32.mrf.mxu0
      %v988 = vpop.f32.mrf.mxu0
      %v989 = vadd.f32 0.0, %v988
      %v990 = vpop.f32.mrf.mxu0
      %991 = vmatprep.mubr.bf16.mxu0 0
      %992 = vmatmul.mubr.bf16.gmra.mxu0 %v506
      %v993 = vpop.f32.mrf.mxu0
      %v994 = vadd.f32 0.0, %v993
      %v995 = vpop.f32.mrf.mxu0
      %v996 = vpop.f32.mrf.mxu0
      %v997 = vadd.f32 0.0, %v996
      %v998 = vpop.f32.mrf.mxu0
      %999 = vmatprep.mubr.bf16.mxu0 0
      %1000 = vmatmul.mubr.bf16.gmra.mxu0 %v507
      %v1001 = vpop.f32.mrf.mxu0
      %v1002 = vadd.f32 0.0, %v1001
      %v1003 = vpop.f32.mrf.mxu0
      %v1004 = vpop.f32.mrf.mxu0
      %v1005 = vadd.f32 0.0, %v1004
      %v1006 = vpop.f32.mrf.mxu0
      %1007 = vmatprep.mubr.bf16.mxu0 0
      %1008 = vmatmul.mubr.bf16.gmra.mxu0 %v508
      %v1009 = vpop.f32.mrf.mxu0
      %v1010 = vadd.f32 0.0, %v1009
      %v1011 = vpop.f32.mrf.mxu0
      %v1012 = vpop.f32.mrf.mxu0
      %v1013 = vadd.f32 0.0, %v1012
      %v1014 = vpop.f32.mrf.mxu0
      %1015 = vmatprep.mubr.bf16.mxu0 0
      %1016 = vmatmul.mubr.bf16.gmra.mxu0 %v509
      %v1017 = vpop.f32.mrf.mxu0
      %v1018 = vadd.f32 0.0, %v1017
      %v1019 = vpop.f32.mrf.mxu0
      %v1020 = vpop.f32.mrf.mxu0
      %v1021 = vadd.f32 0.0, %v1020
      %v1022 = vpop.f32.mrf.mxu0
      %1023 = vdwg.mxu0
      %s1024 = smul.u32 256, 1
      %s1025 = sshll.u32 %s1024, 4
      %1026 = dma.done [#allocation4], %s1025
      %s1027 = scalar_lea.sflag [#allocation4], 1
      %s1028 = sshll.u32 %s1024, 4
      %1029 = dma.done %s1027, %s1028
      %v1030 = vld [vmem:[#allocation2] sm:$0xff]
      %v1031 = vld [vmem:[#allocation2 + $0x8] sm:$0xff]
      %v1032 = vld [vmem:[#allocation2 + $0x10] sm:$0xff]
      %v1033 = vld [vmem:[#allocation2 + $0x18] sm:$0xff]
      %v1034 = vld [vmem:[#allocation2 + $0x20] sm:$0xff]
      %v1035 = vld [vmem:[#allocation2 + $0x28] sm:$0xff]
      %v1036 = vld [vmem:[#allocation2 + $0x30] sm:$0xff]
      %v1037 = vld [vmem:[#allocation2 + $0x38] sm:$0xff]
      %v1038 = vld [vmem:[#allocation2 + $0x40] sm:$0xff]
      %v1039 = vld [vmem:[#allocation2 + $0x48] sm:$0xff]
      %v1040 = vld [vmem:[#allocation2 + $0x50] sm:$0xff]
      %v1041 = vld [vmem:[#allocation2 + $0x58] sm:$0xff]
      %v1042 = vld [vmem:[#allocation2 + $0x60] sm:$0xff]
      %v1043 = vld [vmem:[#allocation2 + $0x68] sm:$0xff]
      %v1044 = vld [vmem:[#allocation2 + $0x70] sm:$0xff]
      %v1045 = vld [vmem:[#allocation2 + $0x78] sm:$0xff]
      %v1046 = vld [vmem:[#allocation2 + $0x80] sm:$0xff]
      %v1047 = vld [vmem:[#allocation2 + $0x88] sm:$0xff]
      %v1048 = vld [vmem:[#allocation2 + $0x90] sm:$0xff]
      %v1049 = vld [vmem:[#allocation2 + $0x98] sm:$0xff]
      %v1050 = vld [vmem:[#allocation2 + $0xa0] sm:$0xff]
      %v1051 = vld [vmem:[#allocation2 + $0xa8] sm:$0xff]
      %v1052 = vld [vmem:[#allocation2 + $0xb0] sm:$0xff]
      %v1053 = vld [vmem:[#allocation2 + $0xb8] sm:$0xff]
      %v1054 = vld [vmem:[#allocation2 + $0xc0] sm:$0xff]
      %v1055 = vld [vmem:[#allocation2 + $0xc8] sm:$0xff]
      %v1056 = vld [vmem:[#allocation2 + $0xd0] sm:$0xff]
      %v1057 = vld [vmem:[#allocation2 + $0xd8] sm:$0xff]
      %v1058 = vld [vmem:[#allocation2 + $0xe0] sm:$0xff]
      %v1059 = vld [vmem:[#allocation2 + $0xe8] sm:$0xff]
      %v1060 = vld [vmem:[#allocation2 + $0xf0] sm:$0xff]
      %v1061 = vld [vmem:[#allocation2 + $0xf8] sm:$0xff]
      %v1062 = vld [vmem:[#allocation3] sm:$0xff]
      %v1063 = vld [vmem:[#allocation3 + $0x8] sm:$0xff]
      %v1064 = vld [vmem:[#allocation3 + $0x10] sm:$0xff]
      %v1065 = vld [vmem:[#allocation3 + $0x18] sm:$0xff]
      %v1066 = vld [vmem:[#allocation3 + $0x20] sm:$0xff]
      %v1067 = vld [vmem:[#allocation3 + $0x28] sm:$0xff]
      %v1068 = vld [vmem:[#allocation3 + $0x30] sm:$0xff]
      %v1069 = vld [vmem:[#allocation3 + $0x38] sm:$0xff]
      %v1070 = vld [vmem:[#allocation3 + $0x40] sm:$0xff]
      %v1071 = vld [vmem:[#allocation3 + $0x48] sm:$0xff]
      %v1072 = vld [vmem:[#allocation3 + $0x50] sm:$0xff]
      %v1073 = vld [vmem:[#allocation3 + $0x58] sm:$0xff]
      %v1074 = vld [vmem:[#allocation3 + $0x60] sm:$0xff]
      %v1075 = vld [vmem:[#allocation3 + $0x68] sm:$0xff]
      %v1076 = vld [vmem:[#allocation3 + $0x70] sm:$0xff]
      %v1077 = vld [vmem:[#allocation3 + $0x78] sm:$0xff]
      %v1078 = vld [vmem:[#allocation3 + $0x80] sm:$0xff]
      %v1079 = vld [vmem:[#allocation3 + $0x88] sm:$0xff]
      %v1080 = vld [vmem:[#allocation3 + $0x90] sm:$0xff]
      %v1081 = vld [vmem:[#allocation3 + $0x98] sm:$0xff]
      %v1082 = vld [vmem:[#allocation3 + $0xa0] sm:$0xff]
      %v1083 = vld [vmem:[#allocation3 + $0xa8] sm:$0xff]
      %v1084 = vld [vmem:[#allocation3 + $0xb0] sm:$0xff]
      %v1085 = vld [vmem:[#allocation3 + $0xb8] sm:$0xff]
      %v1086 = vld [vmem:[#allocation3 + $0xc0] sm:$0xff]
      %v1087 = vld [vmem:[#allocation3 + $0xc8] sm:$0xff]
      %v1088 = vld [vmem:[#allocation3 + $0xd0] sm:$0xff]
      %v1089 = vld [vmem:[#allocation3 + $0xd8] sm:$0xff]
      %v1090 = vld [vmem:[#allocation3 + $0xe0] sm:$0xff]
      %v1091 = vld [vmem:[#allocation3 + $0xe8] sm:$0xff]
      %v1092 = vld [vmem:[#allocation3 + $0xf0] sm:$0xff]
      %v1093 = vld [vmem:[#allocation3 + $0xf8] sm:$0xff]
      %v1094 = vshll.u32 %v1030, 16
      %v1095 = vshll.u32 %v1031, 16
      %v1096 = vshll.u32 %v1032, 16
      %v1097 = vshll.u32 %v1033, 16
      %v1098 = vshll.u32 %v1034, 16
      %v1099 = vshll.u32 %v1035, 16
      %v1100 = vshll.u32 %v1036, 16
      %v1101 = vshll.u32 %v1037, 16
      %v1102 = vshll.u32 %v1038, 16
      %v1103 = vshll.u32 %v1039, 16
      %v1104 = vshll.u32 %v1040, 16
      %v1105 = vshll.u32 %v1041, 16
      %v1106 = vshll.u32 %v1042, 16
      %v1107 = vshll.u32 %v1043, 16
      %v1108 = vshll.u32 %v1044, 16
      %v1109 = vshll.u32 %v1045, 16
      %v1110 = vshll.u32 %v1046, 16
      %v1111 = vshll.u32 %v1047, 16
      %v1112 = vshll.u32 %v1048, 16
      %v1113 = vshll.u32 %v1049, 16
      %v1114 = vshll.u32 %v1050, 16
      %v1115 = vshll.u32 %v1051, 16
      %v1116 = vshll.u32 %v1052, 16
      %v1117 = vshll.u32 %v1053, 16
      %v1118 = vshll.u32 %v1054, 16
      %v1119 = vshll.u32 %v1055, 16
      %v1120 = vshll.u32 %v1056, 16
      %v1121 = vshll.u32 %v1057, 16
      %v1122 = vshll.u32 %v1058, 16
      %v1123 = vshll.u32 %v1059, 16
      %v1124 = vshll.u32 %v1060, 16
      %v1125 = vshll.u32 %v1061, 16
      %v1158 = vshrl.u32 %v1030, 16
      %v1159 = vshrl.u32 %v1031, 16
      %v1160 = vshrl.u32 %v1032, 16
      %v1161 = vshrl.u32 %v1033, 16
      %v1162 = vshrl.u32 %v1034, 16
      %v1163 = vshrl.u32 %v1035, 16
      %v1164 = vshrl.u32 %v1036, 16
      %v1165 = vshrl.u32 %v1037, 16
      %v1166 = vshrl.u32 %v1038, 16
      %v1167 = vshrl.u32 %v1039, 16
      %v1168 = vshrl.u32 %v1040, 16
      %v1169 = vshrl.u32 %v1041, 16
      %v1170 = vshrl.u32 %v1042, 16
      %v1171 = vshrl.u32 %v1043, 16
      %v1172 = vshrl.u32 %v1044, 16
      %v1173 = vshrl.u32 %v1045, 16
      %v1174 = vshrl.u32 %v1046, 16
      %v1175 = vshrl.u32 %v1047, 16
      %v1176 = vshrl.u32 %v1048, 16
      %v1177 = vshrl.u32 %v1049, 16
      %v1178 = vshrl.u32 %v1050, 16
      %v1179 = vshrl.u32 %v1051, 16
      %v1180 = vshrl.u32 %v1052, 16
      %v1181 = vshrl.u32 %v1053, 16
      %v1182 = vshrl.u32 %v1054, 16
      %v1183 = vshrl.u32 %v1055, 16
      %v1184 = vshrl.u32 %v1056, 16
      %v1185 = vshrl.u32 %v1057, 16
      %v1186 = vshrl.u32 %v1058, 16
      %v1187 = vshrl.u32 %v1059, 16
      %v1188 = vshrl.u32 %v1060, 16
      %v1189 = vshrl.u32 %v1061, 16
      %v1190 = vshll.u32 %v1158, 16
      %v1191 = vshll.u32 %v1159, 16
      %v1192 = vshll.u32 %v1160, 16
      %v1193 = vshll.u32 %v1161, 16
      %v1194 = vshll.u32 %v1162, 16
      %v1195 = vshll.u32 %v1163, 16
      %v1196 = vshll.u32 %v1164, 16
      %v1197 = vshll.u32 %v1165, 16
      %v1198 = vshll.u32 %v1166, 16
      %v1199 = vshll.u32 %v1167, 16
      %v1200 = vshll.u32 %v1168, 16
      %v1201 = vshll.u32 %v1169, 16
      %v1202 = vshll.u32 %v1170, 16
      %v1203 = vshll.u32 %v1171, 16
      %v1204 = vshll.u32 %v1172, 16
      %v1205 = vshll.u32 %v1173, 16
      %v1206 = vshll.u32 %v1174, 16
      %v1207 = vshll.u32 %v1175, 16
      %v1208 = vshll.u32 %v1176, 16
      %v1209 = vshll.u32 %v1177, 16
      %v1210 = vshll.u32 %v1178, 16
      %v1211 = vshll.u32 %v1179, 16
      %v1212 = vshll.u32 %v1180, 16
      %v1213 = vshll.u32 %v1181, 16
      %v1214 = vshll.u32 %v1182, 16
      %v1215 = vshll.u32 %v1183, 16
      %v1216 = vshll.u32 %v1184, 16
      %v1217 = vshll.u32 %v1185, 16
      %v1218 = vshll.u32 %v1186, 16
      %v1219 = vshll.u32 %v1187, 16
      %v1220 = vshll.u32 %v1188, 16
      %v1221 = vshll.u32 %v1189, 16
      %v1254 = vshll.u32 %v1062, 16
      %v1255 = vshll.u32 %v1063, 16
      %v1256 = vshll.u32 %v1064, 16
      %v1257 = vshll.u32 %v1065, 16
      %v1258 = vshll.u32 %v1066, 16
      %v1259 = vshll.u32 %v1067, 16
      %v1260 = vshll.u32 %v1068, 16
      %v1261 = vshll.u32 %v1069, 16
      %v1262 = vshll.u32 %v1070, 16
      %v1263 = vshll.u32 %v1071, 16
      %v1264 = vshll.u32 %v1072, 16
      %v1265 = vshll.u32 %v1073, 16
      %v1266 = vshll.u32 %v1074, 16
      %v1267 = vshll.u32 %v1075, 16
      %v1268 = vshll.u32 %v1076, 16
      %v1269 = vshll.u32 %v1077, 16
      %v1270 = vshll.u32 %v1078, 16
      %v1271 = vshll.u32 %v1079, 16
      %v1272 = vshll.u32 %v1080, 16
      %v1273 = vshll.u32 %v1081, 16
      %v1274 = vshll.u32 %v1082, 16
      %v1275 = vshll.u32 %v1083, 16
      %v1276 = vshll.u32 %v1084, 16
      %v1277 = vshll.u32 %v1085, 16
      %v1278 = vshll.u32 %v1086, 16
      %v1279 = vshll.u32 %v1087, 16
      %v1280 = vshll.u32 %v1088, 16
      %v1281 = vshll.u32 %v1089, 16
      %v1282 = vshll.u32 %v1090, 16
      %v1283 = vshll.u32 %v1091, 16
      %v1284 = vshll.u32 %v1092, 16
      %v1285 = vshll.u32 %v1093, 16
      %v1318 = vshrl.u32 %v1062, 16
      %v1319 = vshrl.u32 %v1063, 16
      %v1320 = vshrl.u32 %v1064, 16
      %v1321 = vshrl.u32 %v1065, 16
      %v1322 = vshrl.u32 %v1066, 16
      %v1323 = vshrl.u32 %v1067, 16
      %v1324 = vshrl.u32 %v1068, 16
      %v1325 = vshrl.u32 %v1069, 16
      %v1326 = vshrl.u32 %v1070, 16
      %v1327 = vshrl.u32 %v1071, 16
      %v1328 = vshrl.u32 %v1072, 16
      %v1329 = vshrl.u32 %v1073, 16
      %v1330 = vshrl.u32 %v1074, 16
      %v1331 = vshrl.u32 %v1075, 16
      %v1332 = vshrl.u32 %v1076, 16
      %v1333 = vshrl.u32 %v1077, 16
      %v1334 = vshrl.u32 %v1078, 16
      %v1335 = vshrl.u32 %v1079, 16
      %v1336 = vshrl.u32 %v1080, 16
      %v1337 = vshrl.u32 %v1081, 16
      %v1338 = vshrl.u32 %v1082, 16
      %v1339 = vshrl.u32 %v1083, 16
      %v1340 = vshrl.u32 %v1084, 16
      %v1341 = vshrl.u32 %v1085, 16
      %v1342 = vshrl.u32 %v1086, 16
      %v1343 = vshrl.u32 %v1087, 16
      %v1344 = vshrl.u32 %v1088, 16
      %v1345 = vshrl.u32 %v1089, 16
      %v1346 = vshrl.u32 %v1090, 16
      %v1347 = vshrl.u32 %v1091, 16
      %v1348 = vshrl.u32 %v1092, 16
      %v1349 = vshrl.u32 %v1093, 16
      %v1350 = vshll.u32 %v1318, 16
      %v1351 = vshll.u32 %v1319, 16
      %v1352 = vshll.u32 %v1320, 16
      %v1353 = vshll.u32 %v1321, 16
      %v1354 = vshll.u32 %v1322, 16
      %v1355 = vshll.u32 %v1323, 16
      %v1356 = vshll.u32 %v1324, 16
      %v1357 = vshll.u32 %v1325, 16
      %v1358 = vshll.u32 %v1326, 16
      %v1359 = vshll.u32 %v1327, 16
      %v1360 = vshll.u32 %v1328, 16
      %v1361 = vshll.u32 %v1329, 16
      %v1362 = vshll.u32 %v1330, 16
      %v1363 = vshll.u32 %v1331, 16
      %v1364 = vshll.u32 %v1332, 16
      %v1365 = vshll.u32 %v1333, 16
      %v1366 = vshll.u32 %v1334, 16
      %v1367 = vshll.u32 %v1335, 16
      %v1368 = vshll.u32 %v1336, 16
      %v1369 = vshll.u32 %v1337, 16
      %v1370 = vshll.u32 %v1338, 16
      %v1371 = vshll.u32 %v1339, 16
      %v1372 = vshll.u32 %v1340, 16
      %v1373 = vshll.u32 %v1341, 16
      %v1374 = vshll.u32 %v1342, 16
      %v1375 = vshll.u32 %v1343, 16
      %v1376 = vshll.u32 %v1344, 16
      %v1377 = vshll.u32 %v1345, 16
      %v1378 = vshll.u32 %v1346, 16
      %v1379 = vshll.u32 %v1347, 16
      %v1380 = vshll.u32 %v1348, 16
      %v1381 = vshll.u32 %v1349, 16
      %v1414 = vmul.f32 %v1094, %v705
      %v1415 = vmul.f32 %v1095, %v709
      %v1416 = vmul.f32 %v1096, %v715
      %v1417 = vmul.f32 %v1097, %v719
      %v1418 = vmul.f32 %v1098, %v725
      %v1419 = vmul.f32 %v1099, %v729
      %v1420 = vmul.f32 %v1100, %v735
      %v1421 = vmul.f32 %v1101, %v739
      %v1422 = vmul.f32 %v1102, %v745
      %v1423 = vmul.f32 %v1103, %v749
      %v1424 = vmul.f32 %v1104, %v755
      %v1425 = vmul.f32 %v1105, %v759
      %v1426 = vmul.f32 %v1106, %v765
      %v1427 = vmul.f32 %v1107, %v769
      %v1428 = vmul.f32 %v1108, %v775
      %v1429 = vmul.f32 %v1109, %v779
      %v1430 = vmul.f32 %v1110, %v785
      %v1431 = vmul.f32 %v1111, %v789
      %v1432 = vmul.f32 %v1112, %v795
      %v1433 = vmul.f32 %v1113, %v799
      %v1434 = vmul.f32 %v1114, %v805
      %v1435 = vmul.f32 %v1115, %v809
      %v1436 = vmul.f32 %v1116, %v815
      %v1437 = vmul.f32 %v1117, %v819
      %v1438 = vmul.f32 %v1118, %v825
      %v1439 = vmul.f32 %v1119, %v829
      %v1440 = vmul.f32 %v1120, %v835
      %v1441 = vmul.f32 %v1121, %v839
      %v1442 = vmul.f32 %v1122, %v845
      %v1443 = vmul.f32 %v1123, %v849
      %v1444 = vmul.f32 %v1124, %v855
      %v1445 = vmul.f32 %v1125, %v859
      %v1446 = vmul.f32 %v1254, %v707
      %v1447 = vmul.f32 %v1255, %v711
      %v1448 = vmul.f32 %v1256, %v717
      %v1449 = vmul.f32 %v1257, %v721
      %v1450 = vmul.f32 %v1258, %v727
      %v1451 = vmul.f32 %v1259, %v731
      %v1452 = vmul.f32 %v1260, %v737
      %v1453 = vmul.f32 %v1261, %v741
      %v1454 = vmul.f32 %v1262, %v747
      %v1455 = vmul.f32 %v1263, %v751
      %v1456 = vmul.f32 %v1264, %v757
      %v1457 = vmul.f32 %v1265, %v761
      %v1458 = vmul.f32 %v1266, %v767
      %v1459 = vmul.f32 %v1267, %v771
      %v1460 = vmul.f32 %v1268, %v777
      %v1461 = vmul.f32 %v1269, %v781
      %v1462 = vmul.f32 %v1270, %v787
      %v1463 = vmul.f32 %v1271, %v791
      %v1464 = vmul.f32 %v1272, %v797
      %v1465 = vmul.f32 %v1273, %v801
      %v1466 = vmul.f32 %v1274, %v807
      %v1467 = vmul.f32 %v1275, %v811
      %v1468 = vmul.f32 %v1276, %v817
      %v1469 = vmul.f32 %v1277, %v821
      %v1470 = vmul.f32 %v1278, %v827
      %v1471 = vmul.f32 %v1279, %v831
      %v1472 = vmul.f32 %v1280, %v837
      %v1473 = vmul.f32 %v1281, %v841
      %v1474 = vmul.f32 %v1282, %v847
      %v1475 = vmul.f32 %v1283, %v851
      %v1476 = vmul.f32 %v1284, %v857
      %v1477 = vmul.f32 %v1285, %v861
      %v1478 = vadd.f32 %v1414, %v1446
      %v1479 = vadd.f32 %v1415, %v1447
      %v1480 = vadd.f32 %v1416, %v1448
      %v1481 = vadd.f32 %v1417, %v1449
      %v1482 = vadd.f32 %v1418, %v1450
      %v1483 = vadd.f32 %v1419, %v1451
      %v1484 = vadd.f32 %v1420, %v1452
      %v1485 = vadd.f32 %v1421, %v1453
      %v1486 = vadd.f32 %v1422, %v1454
      %v1487 = vadd.f32 %v1423, %v1455
      %v1488 = vadd.f32 %v1424, %v1456
      %v1489 = vadd.f32 %v1425, %v1457
      %v1490 = vadd.f32 %v1426, %v1458
      %v1491 = vadd.f32 %v1427, %v1459
      %v1492 = vadd.f32 %v1428, %v1460
      %v1493 = vadd.f32 %v1429, %v1461
      %v1494 = vadd.f32 %v1430, %v1462
      %v1495 = vadd.f32 %v1431, %v1463
      %v1496 = vadd.f32 %v1432, %v1464
      %v1497 = vadd.f32 %v1433, %v1465
      %v1498 = vadd.f32 %v1434, %v1466
      %v1499 = vadd.f32 %v1435, %v1467
      %v1500 = vadd.f32 %v1436, %v1468
      %v1501 = vadd.f32 %v1437, %v1469
      %v1502 = vadd.f32 %v1438, %v1470
      %v1503 = vadd.f32 %v1439, %v1471
      %v1504 = vadd.f32 %v1440, %v1472
      %v1505 = vadd.f32 %v1441, %v1473
      %v1506 = vadd.f32 %v1442, %v1474
      %v1507 = vadd.f32 %v1443, %v1475
      %v1508 = vadd.f32 %v1444, %v1476
      %v1509 = vadd.f32 %v1445, %v1477
      %v1510 = vmul.f32 %v1190, %v898
      %v1511 = vmul.f32 %v1191, %v901
      %v1512 = vmul.f32 %v1192, %v906
      %v1513 = vmul.f32 %v1193, %v909
      %v1514 = vmul.f32 %v1194, %v914
      %v1515 = vmul.f32 %v1195, %v917
      %v1516 = vmul.f32 %v1196, %v922
      %v1517 = vmul.f32 %v1197, %v925
      %v1518 = vmul.f32 %v1198, %v930
      %v1519 = vmul.f32 %v1199, %v933
      %v1520 = vmul.f32 %v1200, %v938
      %v1521 = vmul.f32 %v1201, %v941
      %v1522 = vmul.f32 %v1202, %v946
      %v1523 = vmul.f32 %v1203, %v949
      %v1524 = vmul.f32 %v1204, %v954
      %v1525 = vmul.f32 %v1205, %v957
      %v1526 = vmul.f32 %v1206, %v962
      %v1527 = vmul.f32 %v1207, %v965
      %v1528 = vmul.f32 %v1208, %v970
      %v1529 = vmul.f32 %v1209, %v973
      %v1530 = vmul.f32 %v1210, %v978
      %v1531 = vmul.f32 %v1211, %v981
      %v1532 = vmul.f32 %v1212, %v986
      %v1533 = vmul.f32 %v1213, %v989
      %v1534 = vmul.f32 %v1214, %v994
      %v1535 = vmul.f32 %v1215, %v997
      %v1536 = vmul.f32 %v1216, %v1002
      %v1537 = vmul.f32 %v1217, %v1005
      %v1538 = vmul.f32 %v1218, %v1010
      %v1539 = vmul.f32 %v1219, %v1013
      %v1540 = vmul.f32 %v1220, %v1018
      %v1541 = vmul.f32 %v1221, %v1021
      %v1542 = vmul.f32 %v1510, %v1350
      %v1543 = vmul.f32 %v1511, %v1351
      %v1544 = vmul.f32 %v1512, %v1352
      %v1545 = vmul.f32 %v1513, %v1353
      %v1546 = vmul.f32 %v1514, %v1354
      %v1547 = vmul.f32 %v1515, %v1355
      %v1548 = vmul.f32 %v1516, %v1356
      %v1549 = vmul.f32 %v1517, %v1357
      %v1550 = vmul.f32 %v1518, %v1358
      %v1551 = vmul.f32 %v1519, %v1359
      %v1552 = vmul.f32 %v1520, %v1360
      %v1553 = vmul.f32 %v1521, %v1361
      %v1554 = vmul.f32 %v1522, %v1362
      %v1555 = vmul.f32 %v1523, %v1363
      %v1556 = vmul.f32 %v1524, %v1364
      %v1557 = vmul.f32 %v1525, %v1365
      %v1558 = vmul.f32 %v1526, %v1366
      %v1559 = vmul.f32 %v1527, %v1367
      %v1560 = vmul.f32 %v1528, %v1368
      %v1561 = vmul.f32 %v1529, %v1369
      %v1562 = vmul.f32 %v1530, %v1370
      %v1563 = vmul.f32 %v1531, %v1371
      %v1564 = vmul.f32 %v1532, %v1372
      %v1565 = vmul.f32 %v1533, %v1373
      %v1566 = vmul.f32 %v1534, %v1374
      %v1567 = vmul.f32 %v1535, %v1375
      %v1568 = vmul.f32 %v1536, %v1376
      %v1569 = vmul.f32 %v1537, %v1377
      %v1570 = vmul.f32 %v1538, %v1378
      %v1571 = vmul.f32 %v1539, %v1379
      %v1572 = vmul.f32 %v1540, %v1380
      %v1573 = vmul.f32 %v1541, %v1381
      %v1574 = vadd.f32 %v1478, %v1542
      %v1575 = vadd.f32 %v1479, %v1543
      %v1576 = vadd.f32 %v1480, %v1544
      %v1577 = vadd.f32 %v1481, %v1545
      %v1578 = vadd.f32 %v1482, %v1546
      %v1579 = vadd.f32 %v1483, %v1547
      %v1580 = vadd.f32 %v1484, %v1548
      %v1581 = vadd.f32 %v1485, %v1549
      %v1582 = vadd.f32 %v1486, %v1550
      %v1583 = vadd.f32 %v1487, %v1551
      %v1584 = vadd.f32 %v1488, %v1552
      %v1585 = vadd.f32 %v1489, %v1553
      %v1586 = vadd.f32 %v1490, %v1554
      %v1587 = vadd.f32 %v1491, %v1555
      %v1588 = vadd.f32 %v1492, %v1556
      %v1589 = vadd.f32 %v1493, %v1557
      %v1590 = vadd.f32 %v1494, %v1558
      %v1591 = vadd.f32 %v1495, %v1559
      %v1592 = vadd.f32 %v1496, %v1560
      %v1593 = vadd.f32 %v1497, %v1561
      %v1594 = vadd.f32 %v1498, %v1562
      %v1595 = vadd.f32 %v1499, %v1563
      %v1596 = vadd.f32 %v1500, %v1564
      %v1597 = vadd.f32 %v1501, %v1565
      %v1598 = vadd.f32 %v1502, %v1566
      %v1599 = vadd.f32 %v1503, %v1567
      %v1600 = vadd.f32 %v1504, %v1568
      %v1601 = vadd.f32 %v1505, %v1569
      %v1602 = vadd.f32 %v1506, %v1570
      %v1603 = vadd.f32 %v1507, %v1571
      %v1604 = vadd.f32 %v1508, %v1572
      %v1605 = vadd.f32 %v1509, %v1573
      %1606 = vadd.xlane.f32.xlu0 %v1574
      %v1607 = vpop.xlane.xlu0 %1606
      %1608 = vadd.xlane.f32.xlu0 %v1575
      %v1609 = vpop.xlane.xlu0 %1608
      %1610 = vadd.xlane.f32.xlu0 %v1576
      %v1611 = vpop.xlane.xlu0 %1610
      %1612 = vadd.xlane.f32.xlu0 %v1577
      %v1613 = vpop.xlane.xlu0 %1612
      %1614 = vadd.xlane.f32.xlu0 %v1578
      %v1615 = vpop.xlane.xlu0 %1614
      %1616 = vadd.xlane.f32.xlu0 %v1579
      %v1617 = vpop.xlane.xlu0 %1616
      %1618 = vadd.xlane.f32.xlu0 %v1580
      %v1619 = vpop.xlane.xlu0 %1618
      %1620 = vadd.xlane.f32.xlu0 %v1581
      %v1621 = vpop.xlane.xlu0 %1620
      %1622 = vadd.xlane.f32.xlu0 %v1582
      %v1623 = vpop.xlane.xlu0 %1622
      %1624 = vadd.xlane.f32.xlu0 %v1583
      %v1625 = vpop.xlane.xlu0 %1624
      %1626 = vadd.xlane.f32.xlu0 %v1584
      %v1627 = vpop.xlane.xlu0 %1626
      %1628 = vadd.xlane.f32.xlu0 %v1585
      %v1629 = vpop.xlane.xlu0 %1628
      %1630 = vadd.xlane.f32.xlu0 %v1586
      %v1631 = vpop.xlane.xlu0 %1630
      %1632 = vadd.xlane.f32.xlu0 %v1587
      %v1633 = vpop.xlane.xlu0 %1632
      %1634 = vadd.xlane.f32.xlu0 %v1588
      %v1635 = vpop.xlane.xlu0 %1634
      %1636 = vadd.xlane.f32.xlu0 %v1589
      %v1637 = vpop.xlane.xlu0 %1636
      %1638 = vadd.xlane.f32.xlu0 %v1590
      %v1639 = vpop.xlane.xlu0 %1638
      %1640 = vadd.xlane.f32.xlu0 %v1591
      %v1641 = vpop.xlane.xlu0 %1640
      %1642 = vadd.xlane.f32.xlu0 %v1592
      %v1643 = vpop.xlane.xlu0 %1642
      %1644 = vadd.xlane.f32.xlu0 %v1593
      %v1645 = vpop.xlane.xlu0 %1644
      %1646 = vadd.xlane.f32.xlu0 %v1594
      %v1647 = vpop.xlane.xlu0 %1646
      %1648 = vadd.xlane.f32.xlu0 %v1595
      %v1649 = vpop.xlane.xlu0 %1648
      %1650 = vadd.xlane.f32.xlu0 %v1596
      %v1651 = vpop.xlane.xlu0 %1650
      %1652 = vadd.xlane.f32.xlu0 %v1597
      %v1653 = vpop.xlane.xlu0 %1652
      %1654 = vadd.xlane.f32.xlu0 %v1598
      %v1655 = vpop.xlane.xlu0 %1654
      %1656 = vadd.xlane.f32.xlu0 %v1599
      %v1657 = vpop.xlane.xlu0 %1656
      %1658 = vadd.xlane.f32.xlu0 %v1600
      %v1659 = vpop.xlane.xlu0 %1658
      %1660 = vadd.xlane.f32.xlu0 %v1601
      %v1661 = vpop.xlane.xlu0 %1660
      %1662 = vadd.xlane.f32.xlu0 %v1602
      %v1663 = vpop.xlane.xlu0 %1662
      %1664 = vadd.xlane.f32.xlu0 %v1603
      %v1665 = vpop.xlane.xlu0 %1664
      %1666 = vadd.xlane.f32.xlu0 %v1604
      %v1667 = vpop.xlane.xlu0 %1666
      %1668 = vadd.xlane.f32.xlu0 %v1605
      %v1669 = vpop.xlane.xlu0 %1668
      %vm1670 = vcmask 7168
      %1671 = vst.msk [vmem:[%s158] sm:$0xff] %vm1670, %v1607
      %1672 = vst.msk [vmem:[%s158 + $0x8] sm:$0xff] %vm1670, %v1609
      %1673 = vst.msk [vmem:[%s158 + $0x10] sm:$0xff] %vm1670, %v1611
      %1674 = vst.msk [vmem:[%s158 + $0x18] sm:$0xff] %vm1670, %v1613
      %1675 = vst.msk [vmem:[%s158 + $0x20] sm:$0xff] %vm1670, %v1615
      %1676 = vst.msk [vmem:[%s158 + $0x28] sm:$0xff] %vm1670, %v1617
      %1677 = vst.msk [vmem:[%s158 + $0x30] sm:$0xff] %vm1670, %v1619
      %1678 = vst.msk [vmem:[%s158 + $0x38] sm:$0xff] %vm1670, %v1621
      %1679 = vst.msk [vmem:[%s158 + $0x40] sm:$0xff] %vm1670, %v1623
      %1680 = vst.msk [vmem:[%s158 + $0x48] sm:$0xff] %vm1670, %v1625
      %1681 = vst.msk [vmem:[%s158 + $0x50] sm:$0xff] %vm1670, %v1627
      %1682 = vst.msk [vmem:[%s158 + $0x58] sm:$0xff] %vm1670, %v1629
      %1683 = vst.msk [vmem:[%s158 + $0x60] sm:$0xff] %vm1670, %v1631
      %1684 = vst.msk [vmem:[%s158 + $0x68] sm:$0xff] %vm1670, %v1633
      %1685 = vst.msk [vmem:[%s158 + $0x70] sm:$0xff] %vm1670, %v1635
      %1686 = vst.msk [vmem:[%s158 + $0x78] sm:$0xff] %vm1670, %v1637
      %1687 = vst.msk [vmem:[%s158 + $0x80] sm:$0xff] %vm1670, %v1639
      %1688 = vst.msk [vmem:[%s158 + $0x88] sm:$0xff] %vm1670, %v1641
      %1689 = vst.msk [vmem:[%s158 + $0x90] sm:$0xff] %vm1670, %v1643
      %1690 = vst.msk [vmem:[%s158 + $0x98] sm:$0xff] %vm1670, %v1645
      %1691 = vst.msk [vmem:[%s158 + $0xa0] sm:$0xff] %vm1670, %v1647
      %1692 = vst.msk [vmem:[%s158 + $0xa8] sm:$0xff] %vm1670, %v1649
      %1693 = vst.msk [vmem:[%s158 + $0xb0] sm:$0xff] %vm1670, %v1651
      %1694 = vst.msk [vmem:[%s158 + $0xb8] sm:$0xff] %vm1670, %v1653
      %1695 = vst.msk [vmem:[%s158 + $0xc0] sm:$0xff] %vm1670, %v1655
      %1696 = vst.msk [vmem:[%s158 + $0xc8] sm:$0xff] %vm1670, %v1657
      %1697 = vst.msk [vmem:[%s158 + $0xd0] sm:$0xff] %vm1670, %v1659
      %1698 = vst.msk [vmem:[%s158 + $0xd8] sm:$0xff] %vm1670, %v1661
      %1699 = vst.msk [vmem:[%s158 + $0xe0] sm:$0xff] %vm1670, %v1663
      %1700 = vst.msk [vmem:[%s158 + $0xe8] sm:$0xff] %vm1670, %v1665
      %1701 = vst.msk [vmem:[%s158 + $0xf0] sm:$0xff] %vm1670, %v1667
      %1702 = vst.msk [vmem:[%s158 + $0xf8] sm:$0xff] %vm1670, %v1669
      %s1703 = smul.u32 32, %s26
      %p1704 = scmp.lt.s32.totalorder %s1703, 63
      %s1705 = scalar_select %p1704, %s1703, 63
      %s1706 = smul.addr %s1705, 8
      %s1707 = scalar_lea.vmem %s5, %s1706
      // Predicated region
      $region96: #{tpu_custom_call.1} parent=27 // pred_check
        %p1708 = pneg %p91
      $region97: #{tpu_custom_call.1} parent=27 // pred_check_branch
        %1710 = sbr.rel (%p1708) target = $region99
      $region98: #{tpu_custom_call.1} parent=27 // pred_region
        %s1711 = smul.u32 32, %s26
      $region99: #{tpu_custom_call.1} parent=27 // pred_fallthru
        _
    $region28: #{tpu_custom_call.1} parent=5 // pred_fallthru
      _
    %p1712 = scmp.le.s32.totalorder 2, %s21
    // Predicated region
    $region100: #{tpu_custom_call.1} parent=5 // pred_check
      %p1713 = pneg %p1712
    $region101: #{tpu_custom_call.1} parent=5 // pred_check_branch
      %1715 = sbr.rel (%p1713) target = $region103
    $region102: #{tpu_custom_call.1} parent=5 // pred_region
      %s1716 = ssub.s32 %s21, 2
      // Predicated region
      $region104: #{tpu_custom_call.1} parent=102 // pred_check
        %p1717 = pneg %p97
      $region105: #{tpu_custom_call.1} parent=102 // pred_check_branch
        %1719 = sbr.rel (%p1717) target = $region107
      $region106: #{tpu_custom_call.1} parent=102 // pred_region
        %s1720 = smul.u32 32, %s27
        %p1721 = scmp.lt.s32.totalorder %s1720, 63
        %s1722 = scalar_select %p1721, %s1720, 63
        %s1723 = smul.addr %s1722, 8
        %s1724 = scalar_lea.vmem %s5, %s1723
      $region107: #{tpu_custom_call.1} parent=102 // pred_fallthru
        _
    $region103: #{tpu_custom_call.1} parent=5 // pred_fallthru
      _
  $region6: #{tpu_custom_call.1} parent=0 // loop_footer
    %s25 = sadd.s32 1, %s21
  $region7: #{tpu_custom_call.1} parent=0 // loop_footer_branch
    %20 = sbr.rel target = $region3
  $region8: #{tpu_custom_call.1} parent=0 // loop_exit
    _
  %1725 = vsyncmov [#allocation4]
  %s1726 = vpop.sfrf %1725
  %p1727 = scmp.eq.s32.totalorder %s1726, 0
  %p1728 = pneg %p1727
  %1730 = shalt.err (%p1728)
  %s1731 = scalar_lea.sflag [#allocation4], 1
  %1732 = vsyncmov %s1731
  %s1733 = vpop.sfrf %1732
  %p1734 = scmp.eq.s32.totalorder %s1733, 0
  %p1735 = pneg %p1734
  %1737 = shalt.err (%p1735)

</llo_original>
